<compile_context>
chip_gen: v7x
topology: tpu7x:2x2x1
jax: 0.10.0
libtpu: 0.0.40
codegen_flags: <defaults>
</compile_context>

<pallas_src>
import jax
import jax.numpy as jnp
from jax.experimental import pallas as pl
from jax.experimental.pallas import tpu as pltpu

_LANES = 128
_SMALL_INPUT_BYTES = 256 * 1024          # below this, plain XLA wins (and fuses)
_VMEM_LIMIT_BYTES = 32 * 1024 * 1024     # explicit scoped-VMEM budget for Mosaic
_VMEM_BUDGET_BYTES = 24 * 1024 * 1024    # what the tiling actually plans to use
_TARGET_BLOCK_BYTES = 4 * 1024 * 1024    # ~4 MiB I/O tiles (mem-bound sweet spot)
_KERNEL_DTYPES = (jnp.float32, jnp.bfloat16)  # TPU vreg-friendly; f64/others -> XLA


def _swish_f32(x):
    # sigmoid(x) == 0.5 * tanh(0.5 * x) + 0.5  -> a single EUP transcendental
    # per element (keeps bf16-on-v7x memory-bound instead of EUP-bound).
    return x * (0.5 * jnp.tanh(0.5 * x) + 0.5)


def _swish_kernel(x_ref, o_ref):
    x = x_ref[...].astype(jnp.float32)            # f32 compute
    o_ref[...] = _swish_f32(x).astype(o_ref.dtype)  # narrow-dtype store


def _swish_xla(x):
    # Single-pass fallback for tiny / ragged / unsupported-dtype inputs.
    return _swish_f32(x.astype(jnp.float32)).astype(x.dtype)


def _tensorcores_per_chip() -> int:
    """Best-effort detection: 2 TensorCores per chip on v7x, else 1."""
    try:
        kind = jax.devices()[0].device_kind.lower()
    except Exception:
        return 1
    return 2 if "7" in kind else 1


def _round_up(v: int, m: int) -> int:
    return -(-v // m) * m


def _pick_tiling(rows: int, row_align: int, itemsize: int, num_cores: int):
    """Pick (tile_rows, num_blocks): large sublane-aligned I/O tiles bounded by
    a VMEM budget, with an even block count when sharded over 2 TensorCores."""
    # Per-row VMEM cost: double-buffered in+out plus ~2 live f32 temporaries
    # from the f32 compute chain (conservative estimate).
    per_row = 4 * itemsize * _LANES + 2 * 4 * _LANES
    rows_vmem = max(row_align, (_VMEM_BUDGET_BYTES // per_row) // row_align * row_align)
    rows_tgt = max(row_align,
                   (_TARGET_BLOCK_BYTES // (itemsize * _LANES)) // row_align * row_align)
    max_tile_rows = min(rows_vmem, rows_tgt)

    nb = max(1, pl.cdiv(rows, max_tile_rows))
    want_even = num_cores >= 2
    if want_even:
        if nb == 1 and rows * _LANES * itemsize >= (1 << 20):
            nb = 2                  # give both v7x TensorCores work
        elif nb > 1 and nb % 2:
            nb += 1                 # balance the 2-TC split (avoid 2-vs-1 tiles)

    tile_rows = max_tile_rows
    for _ in range(4):              # realize an (even) block count with aligned tiles
        tile_rows = min(max_tile_rows,
                        max(row_align, _round_up(pl.cdiv(rows, nb), row_align)))
        actual = pl.cdiv(rows, tile_rows)
        if not want_even or actual <= 1 or actual % 2 == 0:
            return tile_rows, actual
        nb = actual + 1
    return tile_rows, pl.cdiv(rows, tile_rows)


def swish(x: jax.Array) -> jax.Array:
    """Elementwise swish(x) = x * sigmoid(x) via a Pallas TPU kernel.

    Falls back to plain XLA when the tensor is tiny (pallas_call fixed cost
    dominates and XLA can fuse it), when the element count is not a multiple
    of 128 (a pad/slice round trip would ~3x the HBM traffic of this purely
    memory-bound op), or for dtypes without TPU vreg support (e.g. float64).
    """
    # TODO(synk): in the full model, fuse swish into the producer conv/matmul
    # kernel's epilogue to avoid this extra HBM read+write entirely.
    orig_shape = x.shape
    dtype = x.dtype
    n = x.size
    itemsize = jnp.dtype(dtype).itemsize

    if dtype not in _KERNEL_DTYPES:
        return _swish_xla(x)
    if n == 0 or n * itemsize < _SMALL_INPUT_BYTES or n % _LANES != 0:
        return _swish_xla(x)

    rows = n // _LANES
    row_align = max(8, 32 // itemsize)     # sublane packing: 8 (f32) / 16 (bf16)
    x2d = x.reshape(rows, _LANES)          # copy-free lane-dense view

    num_cores = _tensorcores_per_chip()
    tile_rows, num_blocks = _pick_tiling(rows, row_align, itemsize, num_cores)

    out2d = pl.pallas_call(
        _swish_kernel,
        out_shape=jax.ShapeDtypeStruct((rows, _LANES), dtype),
        grid_spec=pltpu.PrefetchScalarGridSpec(
            num_scalar_prefetch=0,
            grid=(num_blocks,),
            in_specs=[pl.BlockSpec((tile_rows, _LANES), lambda i: (i, 0))],
            out_specs=pl.BlockSpec((tile_rows, _LANES), lambda i: (i, 0)),
        ),
        compiler_params=pltpu.CompilerParams(
            dimension_semantics=("parallel",),
            vmem_limit_bytes=_VMEM_LIMIT_BYTES,
        ),
        cost_estimate=pl.CostEstimate(
            flops=5 * n,
            transcendentals=n,
            bytes_accessed=2 * n * itemsize,
        ),
    )(x2d)
    return out2d.reshape(orig_shape)


if __name__ == "__main__":
    key = jax.random.PRNGKey(0)
    k0, k1, k2, k3 = jax.random.split(key, 4)

    def ref_swish(v):
        vf = v.astype(jnp.float32)
        return (vf * jax.nn.sigmoid(vf)).astype(v.dtype)

    # 1) Small NCHW input exactly as Swish sees it after a conv block
    #    (tiny -> single-pass XLA fallback path).
    x_small = jax.random.normal(k0, (2, 4, 16, 16), dtype=jnp.float32)
    out_small = jax.block_until_ready(swish(x_small))
    assert out_small.shape == x_small.shape and out_small.dtype == x_small.dtype
    assert jnp.max(jnp.abs(out_small - ref_swish(x_small))) < 1e-5

    # 2) 1 MiB f32 feature map -> Pallas kernel path (copy-free (rows,128) view,
    #    even 2-block grid on 2-TC chips, single block on v5e/v6e).
    x_f32 = jax.random.normal(k1, (2, 32, 64, 64), dtype=jnp.float32)
    out_f32 = jax.block_until_ready(swish(x_f32))
    assert out_f32.shape == x_f32.shape and out_f32.dtype == x_f32.dtype
    assert jnp.max(jnp.abs(out_f32 - ref_swish(x_f32))) < 1e-5

    # 3) bf16 feature map (>256 KiB, element count multiple of 128 but rows not
    #    a multiple of the tile) -> kernel path with f32 compute / bf16 store.
    x_bf16 = jax.random.normal(k2, (4, 16, 64, 65), dtype=jnp.bfloat16)
    out_bf16 = jax.block_until_ready(swish(x_bf16))
    ref_b = ref_swish(x_bf16)
    assert out_bf16.shape == x_bf16.shape and out_bf16.dtype == x_bf16.dtype
    # tolerance ~= 1-2 bf16 ulps at |value| ~ 5
    assert jnp.max(jnp.abs(out_bf16.astype(jnp.float32)
                           - ref_b.astype(jnp.float32))) < 5e-2

    # 4) Ragged size (not a multiple of 128) -> single-pass XLA fallback
    #    (no pad + kernel + slice round trip).
    x_rag = jax.random.normal(k3, (3, 5, 7), dtype=jnp.bfloat16)
    out_rag = jax.block_until_ready(swish(x_rag))
    ref_r = ref_swish(x_rag)
    assert out_rag.shape == x_rag.shape and out_rag.dtype == x_rag.dtype
    assert jnp.max(jnp.abs(out_rag.astype(jnp.float32)
                           - ref_r.astype(jnp.float32))) < 5e-2

    print("KERNEL_OK")
</pallas_src>

<mosaic_0001>
module attributes {stable_mosaic.version = 11 : i64} {
  func.func @_swish_kernel(%arg0: i32, %arg1: memref<2048x128xf32, #tpu.memory_space<vmem>>, %arg2: memref<2048x128xf32, #tpu.memory_space<vmem>>) attributes {dimension_semantics = [#tpu.dimension_semantics<parallel>], iteration_bounds = array<i64: 1>, scalar_prefetch = 0 : i64, scratch_operands = 0 : i64, tpu.core_type = #tpu.core_type<tc>, window_params = [{transform_indices = @transform_0, window_bounds = array<i64: 2048, 128>}, {transform_indices = @transform_1, window_bounds = array<i64: 2048, 128>}]} {
    %c0 = arith.constant 0 : index
    %c0_0 = arith.constant 0 : index
    %0 = vector.load %arg1[%c0, %c0_0] : memref<2048x128xf32, #tpu.memory_space<vmem>>, vector<2048x128xf32>
    %cst = arith.constant 5.000000e-01 : f32
    %1 = vector.broadcast %cst : f32 to vector<2048x128xf32>
    %2 = arith.mulf %1, %0 : vector<2048x128xf32>
    %3 = math.tanh %2 : vector<2048x128xf32>
    %cst_1 = arith.constant 5.000000e-01 : f32
    %4 = vector.broadcast %cst_1 : f32 to vector<2048x128xf32>
    %5 = arith.mulf %4, %3 : vector<2048x128xf32>
    %cst_2 = arith.constant 5.000000e-01 : f32
    %6 = vector.broadcast %cst_2 : f32 to vector<2048x128xf32>
    %7 = arith.addf %5, %6 : vector<2048x128xf32>
    %8 = arith.mulf %0, %7 : vector<2048x128xf32>
    %c0_3 = arith.constant 0 : index
    %c0_4 = arith.constant 0 : index
    %9 = vector.load %arg2[%c0_3, %c0_4] : memref<2048x128xf32, #tpu.memory_space<vmem>>, vector<2048x128xf32>
    tpu.vector_store %arg2[%c0_3, %c0_4], %8 {strides = array<i32>} : memref<2048x128xf32, #tpu.memory_space<vmem>>, vector<2048x128xf32>,
    return
  }
  func.func @transform_0(%arg0: i32) -> (i32, i32) {
    %c0_i32 = arith.constant 0 : i32
    %c0_i32_0 = arith.constant 0 : i32
    return %arg0, %c0_i32 : i32, i32
  }
  func.func @transform_1(%arg0: i32) -> (i32, i32) {
    %c0_i32 = arith.constant 0 : i32
    %c0_i32_0 = arith.constant 0 : i32
    return %arg0, %c0_i32 : i32, i32
  }
}

</mosaic_0001>

<llo_original>
// kernel: tpu_custom_call.1
$region0: #{tpu_custom_call.1}
  #allocation0 [shape = 'u32[]', space=smem, size = 0x4, offset = 0x4, fixed_abs, tag = 'smem constant byte address 0x4 - core index']
  #allocation1 [shape = 'u32[144,128]{1,0:T(1,128)}', space=vmem, size = 0x12000, scoped, tag = 'internal scratch']
  %s0 = inlined_call_operand.hbm [shape: f32[2048,128], index: 0, kind: input, shape index: {}]
  %s1 = inlined_call_operand.hbm [shape: f32[2048,128], index: 1, kind: output, shape index: {}]
  %s2 = sld [smem:[#allocation0]]
  $region18: #{tpu_custom_call.1} parent=0
    _
  %s4 = ssub.s32 1, %s2
  %s5 = scalar_select 0, %s4, %s2
  $region1: #{tpu_custom_call.1} parent=0
    #allocation2 [shape = 'u8[1048576]{0}', space=vmem, size = 0x100000, scoped, tag = 'input window, operand 0, single buffered']
    #allocation3 [shape = 's32[1]{0}', space=sflag, size = 0x4, scoped, tag = 'scoped memory for tpu_custom_call.1']
    #allocation4 [shape = 's32[1]{0}', space=sflag, size = 0x4, scoped, tag = 'scoped memory for tpu_custom_call.1']
    #allocation5 [shape = 'u8[1048576]{0}', space=vmem, size = 0x100000, scoped, tag = 'output window, operand 0, single buffered']
    %6 = vsyncpa [#allocation3], 0
    %7 = vsyncpa [#allocation4], 0
    // Predicated region
    $region2: #{tpu_custom_call.1} parent=1 // pred_check
      _
    $region3: #{tpu_custom_call.1} parent=1 // pred_check_branch
      %9 = sbr.rel (0) target = $region5
    $region4: #{tpu_custom_call.1} parent=1 // pred_region
      %s11 = ssub.s32 32768, 32768
      %12 = vsyncadd [#allocation3], %s11
      %s13 = sshll.u32 [#allocation2], 4
      %s14 = int_to_ptr.vmem [resolvable:$true] %s13
      %19 = dma.hbm_to_vmem [thread:$0]  %s0, 32768, %s14, [#allocation3], 128, 128, 8
    $region5: #{tpu_custom_call.1} parent=1 // pred_fallthru
      _
    // Predicated region
    $region6: #{tpu_custom_call.1} parent=1 // pred_check
      _
    $region7: #{tpu_custom_call.1} parent=1 // pred_check_branch
      %21 = sbr.rel (0) target = $region9
    $region8: #{tpu_custom_call.1} parent=1 // pred_region
      %22 = dma.done [#allocation3], 32768
    $region9: #{tpu_custom_call.1} parent=1 // pred_fallthru
      _
    %v23 = vld [vmem:[#allocation2] sm:$0xff]
    %v24 = vld [vmem:[#allocation2 + $0x8] sm:$0xff]
    %v25 = vld [vmem:[#allocation2 + $0x10] sm:$0xff]
    %v26 = vld [vmem:[#allocation2 + $0x18] sm:$0xff]
    %v27 = vld [vmem:[#allocation2 + $0x20] sm:$0xff]
    %v28 = vld [vmem:[#allocation2 + $0x28] sm:$0xff]
    %v29 = vld [vmem:[#allocation2 + $0x30] sm:$0xff]
    %v30 = vld [vmem:[#allocation2 + $0x38] sm:$0xff]
    %v31 = vld [vmem:[#allocation2 + $0x40] sm:$0xff]
    %v32 = vld [vmem:[#allocation2 + $0x48] sm:$0xff]
    %v33 = vld [vmem:[#allocation2 + $0x50] sm:$0xff]
    %v34 = vld [vmem:[#allocation2 + $0x58] sm:$0xff]
    %v35 = vld [vmem:[#allocation2 + $0x60] sm:$0xff]
    %v36 = vld [vmem:[#allocation2 + $0x68] sm:$0xff]
    %v37 = vld [vmem:[#allocation2 + $0x70] sm:$0xff]
    %v38 = vld [vmem:[#allocation2 + $0x78] sm:$0xff]
    %v39 = vld [vmem:[#allocation2 + $0x80] sm:$0xff]
    %v40 = vld [vmem:[#allocation2 + $0x88] sm:$0xff]
    %v41 = vld [vmem:[#allocation2 + $0x90] sm:$0xff]
    %v42 = vld [vmem:[#allocation2 + $0x98] sm:$0xff]
    %v43 = vld [vmem:[#allocation2 + $0xa0] sm:$0xff]
    %v44 = vld [vmem:[#allocation2 + $0xa8] sm:$0xff]
    %v45 = vld [vmem:[#allocation2 + $0xb0] sm:$0xff]
    %v46 = vld [vmem:[#allocation2 + $0xb8] sm:$0xff]
    %v47 = vld [vmem:[#allocation2 + $0xc0] sm:$0xff]
    %v48 = vld [vmem:[#allocation2 + $0xc8] sm:$0xff]
    %v49 = vld [vmem:[#allocation2 + $0xd0] sm:$0xff]
    %v50 = vld [vmem:[#allocation2 + $0xd8] sm:$0xff]
    %v51 = vld [vmem:[#allocation2 + $0xe0] sm:$0xff]
    %v52 = vld [vmem:[#allocation2 + $0xe8] sm:$0xff]
    %v53 = vld [vmem:[#allocation2 + $0xf0] sm:$0xff]
    %v54 = vld [vmem:[#allocation2 + $0xf8] sm:$0xff]
    %v55 = vld [vmem:[#allocation2 + $0x100] sm:$0xff]
    %v56 = vld [vmem:[#allocation2 + $0x108] sm:$0xff]
    %v57 = vld [vmem:[#allocation2 + $0x110] sm:$0xff]
    %v58 = vld [vmem:[#allocation2 + $0x118] sm:$0xff]
    %v59 = vld [vmem:[#allocation2 + $0x120] sm:$0xff]
    %v60 = vld [vmem:[#allocation2 + $0x128] sm:$0xff]
    %v61 = vld [vmem:[#allocation2 + $0x130] sm:$0xff]
    %v62 = vld [vmem:[#allocation2 + $0x138] sm:$0xff]
    %v63 = vld [vmem:[#allocation2 + $0x140] sm:$0xff]
    %v64 = vld [vmem:[#allocation2 + $0x148] sm:$0xff]
    %v65 = vld [vmem:[#allocation2 + $0x150] sm:$0xff]
    %v66 = vld [vmem:[#allocation2 + $0x158] sm:$0xff]
    %v67 = vld [vmem:[#allocation2 + $0x160] sm:$0xff]
    %v68 = vld [vmem:[#allocation2 + $0x168] sm:$0xff]
    %v69 = vld [vmem:[#allocation2 + $0x170] sm:$0xff]
    %v70 = vld [vmem:[#allocation2 + $0x178] sm:$0xff]
    %v71 = vld [vmem:[#allocation2 + $0x180] sm:$0xff]
    %v72 = vld [vmem:[#allocation2 + $0x188] sm:$0xff]
    %v73 = vld [vmem:[#allocation2 + $0x190] sm:$0xff]
    %v74 = vld [vmem:[#allocation2 + $0x198] sm:$0xff]
    %v75 = vld [vmem:[#allocation2 + $0x1a0] sm:$0xff]
    %v76 = vld [vmem:[#allocation2 + $0x1a8] sm:$0xff]
    %v77 = vld [vmem:[#allocation2 + $0x1b0] sm:$0xff]
    %v78 = vld [vmem:[#allocation2 + $0x1b8] sm:$0xff]
    %v79 = vld [vmem:[#allocation2 + $0x1c0] sm:$0xff]
    %v80 = vld [vmem:[#allocation2 + $0x1c8] sm:$0xff]
    %v81 = vld [vmem:[#allocation2 + $0x1d0] sm:$0xff]
    %v82 = vld [vmem:[#allocation2 + $0x1d8] sm:$0xff]
    %v83 = vld [vmem:[#allocation2 + $0x1e0] sm:$0xff]
    %v84 = vld [vmem:[#allocation2 + $0x1e8] sm:$0xff]
    %v85 = vld [vmem:[#allocation2 + $0x1f0] sm:$0xff]
    %v86 = vld [vmem:[#allocation2 + $0x1f8] sm:$0xff]
    %v87 = vld [vmem:[#allocation2 + $0x200] sm:$0xff]
    %v88 = vld [vmem:[#allocation2 + $0x208] sm:$0xff]
    %v89 = vld [vmem:[#allocation2 + $0x210] sm:$0xff]
    %v90 = vld [vmem:[#allocation2 + $0x218] sm:$0xff]
    %v91 = vld [vmem:[#allocation2 + $0x220] sm:$0xff]
    %v92 = vld [vmem:[#allocation2 + $0x228] sm:$0xff]
    %v93 = vld [vmem:[#allocation2 + $0x230] sm:$0xff]
    %v94 = vld [vmem:[#allocation2 + $0x238] sm:$0xff]
    %v95 = vld [vmem:[#allocation2 + $0x240] sm:$0xff]
    %v96 = vld [vmem:[#allocation2 + $0x248] sm:$0xff]
    %v97 = vld [vmem:[#allocation2 + $0x250] sm:$0xff]
    %v98 = vld [vmem:[#allocation2 + $0x258] sm:$0xff]
    %v99 = vld [vmem:[#allocation2 + $0x260] sm:$0xff]
    %v100 = vld [vmem:[#allocation2 + $0x268] sm:$0xff]
    %v101 = vld [vmem:[#allocation2 + $0x270] sm:$0xff]
    %v102 = vld [vmem:[#allocation2 + $0x278] sm:$0xff]
    %v103 = vld [vmem:[#allocation2 + $0x280] sm:$0xff]
    %v104 = vld [vmem:[#allocation2 + $0x288] sm:$0xff]
    %v105 = vld [vmem:[#allocation2 + $0x290] sm:$0xff]
    %v106 = vld [vmem:[#allocation2 + $0x298] sm:$0xff]
    %v107 = vld [vmem:[#allocation2 + $0x2a0] sm:$0xff]
    %v108 = vld [vmem:[#allocation2 + $0x2a8] sm:$0xff]
    %v109 = vld [vmem:[#allocation2 + $0x2b0] sm:$0xff]
    %v110 = vld [vmem:[#allocation2 + $0x2b8] sm:$0xff]
    %v111 = vld [vmem:[#allocation2 + $0x2c0] sm:$0xff]
    %v112 = vld [vmem:[#allocation2 + $0x2c8] sm:$0xff]
    %v113 = vld [vmem:[#allocation2 + $0x2d0] sm:$0xff]
    %v114 = vld [vmem:[#allocation2 + $0x2d8] sm:$0xff]
    %v115 = vld [vmem:[#allocation2 + $0x2e0] sm:$0xff]
    %v116 = vld [vmem:[#allocation2 + $0x2e8] sm:$0xff]
    %v117 = vld [vmem:[#allocation2 + $0x2f0] sm:$0xff]
    %v118 = vld [vmem:[#allocation2 + $0x2f8] sm:$0xff]
    %v119 = vld [vmem:[#allocation2 + $0x300] sm:$0xff]
    %v120 = vld [vmem:[#allocation2 + $0x308] sm:$0xff]
    %v121 = vld [vmem:[#allocation2 + $0x310] sm:$0xff]
    %v122 = vld [vmem:[#allocation2 + $0x318] sm:$0xff]
    %v123 = vld [vmem:[#allocation2 + $0x320] sm:$0xff]
    %v124 = vld [vmem:[#allocation2 + $0x328] sm:$0xff]
    %v125 = vld [vmem:[#allocation2 + $0x330] sm:$0xff]
    %v126 = vld [vmem:[#allocation2 + $0x338] sm:$0xff]
    %v127 = vld [vmem:[#allocation2 + $0x340] sm:$0xff]
    %v128 = vld [vmem:[#allocation2 + $0x348] sm:$0xff]
    %v129 = vld [vmem:[#allocation2 + $0x350] sm:$0xff]
    %v130 = vld [vmem:[#allocation2 + $0x358] sm:$0xff]
    %v131 = vld [vmem:[#allocation2 + $0x360] sm:$0xff]
    %v132 = vld [vmem:[#allocation2 + $0x368] sm:$0xff]
    %v133 = vld [vmem:[#allocation2 + $0x370] sm:$0xff]
    %v134 = vld [vmem:[#allocation2 + $0x378] sm:$0xff]
    %v135 = vld [vmem:[#allocation2 + $0x380] sm:$0xff]
    %v136 = vld [vmem:[#allocation2 + $0x388] sm:$0xff]
    %v137 = vld [vmem:[#allocation2 + $0x390] sm:$0xff]
    %v138 = vld [vmem:[#allocation2 + $0x398] sm:$0xff]
    %v139 = vld [vmem:[#allocation2 + $0x3a0] sm:$0xff]
    %v140 = vld [vmem:[#allocation2 + $0x3a8] sm:$0xff]
    %v141 = vld [vmem:[#allocation2 + $0x3b0] sm:$0xff]
    %v142 = vld [vmem:[#allocation2 + $0x3b8] sm:$0xff]
    %v143 = vld [vmem:[#allocation2 + $0x3c0] sm:$0xff]
    %v144 = vld [vmem:[#allocation2 + $0x3c8] sm:$0xff]
    %v145 = vld [vmem:[#allocation2 + $0x3d0] sm:$0xff]
    %v146 = vld [vmem:[#allocation2 + $0x3d8] sm:$0xff]
    %v147 = vld [vmem:[#allocation2 + $0x3e0] sm:$0xff]
    %v148 = vld [vmem:[#allocation2 + $0x3e8] sm:$0xff]
    %v149 = vld [vmem:[#allocation2 + $0x3f0] sm:$0xff]
    %v150 = vld [vmem:[#allocation2 + $0x3f8] sm:$0xff]
    %v151 = vld [vmem:[#allocation2 + $0x400] sm:$0xff]
    %v152 = vld [vmem:[#allocation2 + $0x408] sm:$0xff]
    %v153 = vld [vmem:[#allocation2 + $0x410] sm:$0xff]
    %v154 = vld [vmem:[#allocation2 + $0x418] sm:$0xff]
    %v155 = vld [vmem:[#allocation2 + $0x420] sm:$0xff]
    %v156 = vld [vmem:[#allocation2 + $0x428] sm:$0xff]
    %v157 = vld [vmem:[#allocation2 + $0x430] sm:$0xff]
    %v158 = vld [vmem:[#allocation2 + $0x438] sm:$0xff]
    %v159 = vld [vmem:[#allocation2 + $0x440] sm:$0xff]
    %v160 = vld [vmem:[#allocation2 + $0x448] sm:$0xff]
    %v161 = vld [vmem:[#allocation2 + $0x450] sm:$0xff]
    %v162 = vld [vmem:[#allocation2 + $0x458] sm:$0xff]
    %v163 = vld [vmem:[#allocation2 + $0x460] sm:$0xff]
    %v164 = vld [vmem:[#allocation2 + $0x468] sm:$0xff]
    %v165 = vld [vmem:[#allocation2 + $0x470] sm:$0xff]
    %v166 = vld [vmem:[#allocation2 + $0x478] sm:$0xff]
    %v167 = vld [vmem:[#allocation2 + $0x480] sm:$0xff]
    %v168 = vld [vmem:[#allocation2 + $0x488] sm:$0xff]
    %v169 = vld [vmem:[#allocation2 + $0x490] sm:$0xff]
    %v170 = vld [vmem:[#allocation2 + $0x498] sm:$0xff]
    %v171 = vld [vmem:[#allocation2 + $0x4a0] sm:$0xff]
    %v172 = vld [vmem:[#allocation2 + $0x4a8] sm:$0xff]
    %v173 = vld [vmem:[#allocation2 + $0x4b0] sm:$0xff]
    %v174 = vld [vmem:[#allocation2 + $0x4b8] sm:$0xff]
    %v175 = vld [vmem:[#allocation2 + $0x4c0] sm:$0xff]
    %v176 = vld [vmem:[#allocation2 + $0x4c8] sm:$0xff]
    %v177 = vld [vmem:[#allocation2 + $0x4d0] sm:$0xff]
    %v178 = vld [vmem:[#allocation2 + $0x4d8] sm:$0xff]
    %v179 = vld [vmem:[#allocation2 + $0x4e0] sm:$0xff]
    %v180 = vld [vmem:[#allocation2 + $0x4e8] sm:$0xff]
    %v181 = vld [vmem:[#allocation2 + $0x4f0] sm:$0xff]
    %v182 = vld [vmem:[#allocation2 + $0x4f8] sm:$0xff]
    %v183 = vld [vmem:[#allocation2 + $0x500] sm:$0xff]
    %v184 = vld [vmem:[#allocation2 + $0x508] sm:$0xff]
    %v185 = vld [vmem:[#allocation2 + $0x510] sm:$0xff]
    %v186 = vld [vmem:[#allocation2 + $0x518] sm:$0xff]
    %v187 = vld [vmem:[#allocation2 + $0x520] sm:$0xff]
    %v188 = vld [vmem:[#allocation2 + $0x528] sm:$0xff]
    %v189 = vld [vmem:[#allocation2 + $0x530] sm:$0xff]
    %v190 = vld [vmem:[#allocation2 + $0x538] sm:$0xff]
    %v191 = vld [vmem:[#allocation2 + $0x540] sm:$0xff]
    %v192 = vld [vmem:[#allocation2 + $0x548] sm:$0xff]
    %v193 = vld [vmem:[#allocation2 + $0x550] sm:$0xff]
    %v194 = vld [vmem:[#allocation2 + $0x558] sm:$0xff]
    %v195 = vld [vmem:[#allocation2 + $0x560] sm:$0xff]
    %v196 = vld [vmem:[#allocation2 + $0x568] sm:$0xff]
    %v197 = vld [vmem:[#allocation2 + $0x570] sm:$0xff]
    %v198 = vld [vmem:[#allocation2 + $0x578] sm:$0xff]
    %v199 = vld [vmem:[#allocation2 + $0x580] sm:$0xff]
    %v200 = vld [vmem:[#allocation2 + $0x588] sm:$0xff]
    %v201 = vld [vmem:[#allocation2 + $0x590] sm:$0xff]
    %v202 = vld [vmem:[#allocation2 + $0x598] sm:$0xff]
    %v203 = vld [vmem:[#allocation2 + $0x5a0] sm:$0xff]
    %v204 = vld [vmem:[#allocation2 + $0x5a8] sm:$0xff]
    %v205 = vld [vmem:[#allocation2 + $0x5b0] sm:$0xff]
    %v206 = vld [vmem:[#allocation2 + $0x5b8] sm:$0xff]
    %v207 = vld [vmem:[#allocation2 + $0x5c0] sm:$0xff]
    %v208 = vld [vmem:[#allocation2 + $0x5c8] sm:$0xff]
    %v209 = vld [vmem:[#allocation2 + $0x5d0] sm:$0xff]
    %v210 = vld [vmem:[#allocation2 + $0x5d8] sm:$0xff]
    %v211 = vld [vmem:[#allocation2 + $0x5e0] sm:$0xff]
    %v212 = vld [vmem:[#allocation2 + $0x5e8] sm:$0xff]
    %v213 = vld [vmem:[#allocation2 + $0x5f0] sm:$0xff]
    %v214 = vld [vmem:[#allocation2 + $0x5f8] sm:$0xff]
    %v215 = vld [vmem:[#allocation2 + $0x600] sm:$0xff]
    %v216 = vld [vmem:[#allocation2 + $0x608] sm:$0xff]
    %v217 = vld [vmem:[#allocation2 + $0x610] sm:$0xff]
    %v218 = vld [vmem:[#allocation2 + $0x618] sm:$0xff]
    %v219 = vld [vmem:[#allocation2 + $0x620] sm:$0xff]
    %v220 = vld [vmem:[#allocation2 + $0x628] sm:$0xff]
    %v221 = vld [vmem:[#allocation2 + $0x630] sm:$0xff]
    %v222 = vld [vmem:[#allocation2 + $0x638] sm:$0xff]
    %v223 = vld [vmem:[#allocation2 + $0x640] sm:$0xff]
    %v224 = vld [vmem:[#allocation2 + $0x648] sm:$0xff]
    %v225 = vld [vmem:[#allocation2 + $0x650] sm:$0xff]
    %v226 = vld [vmem:[#allocation2 + $0x658] sm:$0xff]
    %v227 = vld [vmem:[#allocation2 + $0x660] sm:$0xff]
    %v228 = vld [vmem:[#allocation2 + $0x668] sm:$0xff]
    %v229 = vld [vmem:[#allocation2 + $0x670] sm:$0xff]
    %v230 = vld [vmem:[#allocation2 + $0x678] sm:$0xff]
    %v231 = vld [vmem:[#allocation2 + $0x680] sm:$0xff]
    %v232 = vld [vmem:[#allocation2 + $0x688] sm:$0xff]
    %v233 = vld [vmem:[#allocation2 + $0x690] sm:$0xff]
    %v234 = vld [vmem:[#allocation2 + $0x698] sm:$0xff]
    %v235 = vld [vmem:[#allocation2 + $0x6a0] sm:$0xff]
    %v236 = vld [vmem:[#allocation2 + $0x6a8] sm:$0xff]
    %v237 = vld [vmem:[#allocation2 + $0x6b0] sm:$0xff]
    %v238 = vld [vmem:[#allocation2 + $0x6b8] sm:$0xff]
    %v239 = vld [vmem:[#allocation2 + $0x6c0] sm:$0xff]
    %v240 = vld [vmem:[#allocation2 + $0x6c8] sm:$0xff]
    %v241 = vld [vmem:[#allocation2 + $0x6d0] sm:$0xff]
    %v242 = vld [vmem:[#allocation2 + $0x6d8] sm:$0xff]
    %v243 = vld [vmem:[#allocation2 + $0x6e0] sm:$0xff]
    %v244 = vld [vmem:[#allocation2 + $0x6e8] sm:$0xff]
    %v245 = vld [vmem:[#allocation2 + $0x6f0] sm:$0xff]
    %v246 = vld [vmem:[#allocation2 + $0x6f8] sm:$0xff]
    %v247 = vld [vmem:[#allocation2 + $0x700] sm:$0xff]
    %v248 = vld [vmem:[#allocation2 + $0x708] sm:$0xff]
    %v249 = vld [vmem:[#allocation2 + $0x710] sm:$0xff]
    %v250 = vld [vmem:[#allocation2 + $0x718] sm:$0xff]
    %v251 = vld [vmem:[#allocation2 + $0x720] sm:$0xff]
    %v252 = vld [vmem:[#allocation2 + $0x728] sm:$0xff]
    %v253 = vld [vmem:[#allocation2 + $0x730] sm:$0xff]
    %v254 = vld [vmem:[#allocation2 + $0x738] sm:$0xff]
    %v255 = vld [vmem:[#allocation2 + $0x740] sm:$0xff]
    %v256 = vld [vmem:[#allocation2 + $0x748] sm:$0xff]
    %v257 = vld [vmem:[#allocation2 + $0x750] sm:$0xff]
    %v258 = vld [vmem:[#allocation2 + $0x758] sm:$0xff]
    %v259 = vld [vmem:[#allocation2 + $0x760] sm:$0xff]
    %v260 = vld [vmem:[#allocation2 + $0x768] sm:$0xff]
    %v261 = vld [vmem:[#allocation2 + $0x770] sm:$0xff]
    %v262 = vld [vmem:[#allocation2 + $0x778] sm:$0xff]
    %v263 = vld [vmem:[#allocation2 + $0x780] sm:$0xff]
    %v264 = vld [vmem:[#allocation2 + $0x788] sm:$0xff]
    %v265 = vld [vmem:[#allocation2 + $0x790] sm:$0xff]
    %v266 = vld [vmem:[#allocation2 + $0x798] sm:$0xff]
    %v267 = vld [vmem:[#allocation2 + $0x7a0] sm:$0xff]
    %v268 = vld [vmem:[#allocation2 + $0x7a8] sm:$0xff]
    %v269 = vld [vmem:[#allocation2 + $0x7b0] sm:$0xff]
    %v270 = vld [vmem:[#allocation2 + $0x7b8] sm:$0xff]
    %v271 = vld [vmem:[#allocation2 + $0x7c0] sm:$0xff]
    %v272 = vld [vmem:[#allocation2 + $0x7c8] sm:$0xff]
    %v273 = vld [vmem:[#allocation2 + $0x7d0] sm:$0xff]
    %v274 = vld [vmem:[#allocation2 + $0x7d8] sm:$0xff]
    %v275 = vld [vmem:[#allocation2 + $0x7e0] sm:$0xff]
    %v276 = vld [vmem:[#allocation2 + $0x7e8] sm:$0xff]
    %v277 = vld [vmem:[#allocation2 + $0x7f0] sm:$0xff]
    %v278 = vld [vmem:[#allocation2 + $0x7f8] sm:$0xff]
    %v279 = vmul.f32 %v23, 0.5
    %v280 = vmul.f32 %v24, 0.5
    %v281 = vmul.f32 %v25, 0.5
    %v282 = vmul.f32 %v26, 0.5
    %v283 = vmul.f32 %v27, 0.5
    %v284 = vmul.f32 %v28, 0.5
    %v285 = vmul.f32 %v29, 0.5
    %v286 = vmul.f32 %v30, 0.5
    %v287 = vmul.f32 %v31, 0.5
    %v288 = vmul.f32 %v32, 0.5
    %v289 = vmul.f32 %v33, 0.5
    %v290 = vmul.f32 %v34, 0.5
    %v291 = vmul.f32 %v35, 0.5
    %v292 = vmul.f32 %v36, 0.5
    %v293 = vmul.f32 %v37, 0.5
    %v294 = vmul.f32 %v38, 0.5
    %v295 = vmul.f32 %v39, 0.5
    %v296 = vmul.f32 %v40, 0.5
    %v297 = vmul.f32 %v41, 0.5
    %v298 = vmul.f32 %v42, 0.5
    %v299 = vmul.f32 %v43, 0.5
    %v300 = vmul.f32 %v44, 0.5
    %v301 = vmul.f32 %v45, 0.5
    %v302 = vmul.f32 %v46, 0.5
    %v303 = vmul.f32 %v47, 0.5
    %v304 = vmul.f32 %v48, 0.5
    %v305 = vmul.f32 %v49, 0.5
    %v306 = vmul.f32 %v50, 0.5
    %v307 = vmul.f32 %v51, 0.5
    %v308 = vmul.f32 %v52, 0.5
    %v309 = vmul.f32 %v53, 0.5
    %v310 = vmul.f32 %v54, 0.5
    %v311 = vmul.f32 %v55, 0.5
    %v312 = vmul.f32 %v56, 0.5
    %v313 = vmul.f32 %v57, 0.5
    %v314 = vmul.f32 %v58, 0.5
    %v315 = vmul.f32 %v59, 0.5
    %v316 = vmul.f32 %v60, 0.5
    %v317 = vmul.f32 %v61, 0.5
    %v318 = vmul.f32 %v62, 0.5
    %v319 = vmul.f32 %v63, 0.5
    %v320 = vmul.f32 %v64, 0.5
    %v321 = vmul.f32 %v65, 0.5
    %v322 = vmul.f32 %v66, 0.5
    %v323 = vmul.f32 %v67, 0.5
    %v324 = vmul.f32 %v68, 0.5
    %v325 = vmul.f32 %v69, 0.5
    %v326 = vmul.f32 %v70, 0.5
    %v327 = vmul.f32 %v71, 0.5
    %v328 = vmul.f32 %v72, 0.5
    %v329 = vmul.f32 %v73, 0.5
    %v330 = vmul.f32 %v74, 0.5
    %v331 = vmul.f32 %v75, 0.5
    %v332 = vmul.f32 %v76, 0.5
    %v333 = vmul.f32 %v77, 0.5
    %v334 = vmul.f32 %v78, 0.5
    %v335 = vmul.f32 %v79, 0.5
    %v336 = vmul.f32 %v80, 0.5
    %v337 = vmul.f32 %v81, 0.5
    %v338 = vmul.f32 %v82, 0.5
    %v339 = vmul.f32 %v83, 0.5
    %v340 = vmul.f32 %v84, 0.5
    %v341 = vmul.f32 %v85, 0.5
    %v342 = vmul.f32 %v86, 0.5
    %v343 = vmul.f32 %v87, 0.5
    %v344 = vmul.f32 %v88, 0.5
    %v345 = vmul.f32 %v89, 0.5
    %v346 = vmul.f32 %v90, 0.5
    %v347 = vmul.f32 %v91, 0.5
    %v348 = vmul.f32 %v92, 0.5
    %v349 = vmul.f32 %v93, 0.5
    %v350 = vmul.f32 %v94, 0.5
    %v351 = vmul.f32 %v95, 0.5
    %v352 = vmul.f32 %v96, 0.5
    %v353 = vmul.f32 %v97, 0.5
    %v354 = vmul.f32 %v98, 0.5
    %v355 = vmul.f32 %v99, 0.5
    %v356 = vmul.f32 %v100, 0.5
    %v357 = vmul.f32 %v101, 0.5
    %v358 = vmul.f32 %v102, 0.5
    %v359 = vmul.f32 %v103, 0.5
    %v360 = vmul.f32 %v104, 0.5
    %v361 = vmul.f32 %v105, 0.5
    %v362 = vmul.f32 %v106, 0.5
    %v363 = vmul.f32 %v107, 0.5
    %v364 = vmul.f32 %v108, 0.5
    %v365 = vmul.f32 %v109, 0.5
    %v366 = vmul.f32 %v110, 0.5
    %v367 = vmul.f32 %v111, 0.5
    %v368 = vmul.f32 %v112, 0.5
    %v369 = vmul.f32 %v113, 0.5
    %v370 = vmul.f32 %v114, 0.5
    %v371 = vmul.f32 %v115, 0.5
    %v372 = vmul.f32 %v116, 0.5
    %v373 = vmul.f32 %v117, 0.5
    %v374 = vmul.f32 %v118, 0.5
    %v375 = vmul.f32 %v119, 0.5
    %v376 = vmul.f32 %v120, 0.5
    %v377 = vmul.f32 %v121, 0.5
    %v378 = vmul.f32 %v122, 0.5
    %v379 = vmul.f32 %v123, 0.5
    %v380 = vmul.f32 %v124, 0.5
    %v381 = vmul.f32 %v125, 0.5
    %v382 = vmul.f32 %v126, 0.5
    %v383 = vmul.f32 %v127, 0.5
    %v384 = vmul.f32 %v128, 0.5
    %v385 = vmul.f32 %v129, 0.5
    %v386 = vmul.f32 %v130, 0.5
    %v387 = vmul.f32 %v131, 0.5
    %v388 = vmul.f32 %v132, 0.5
    %v389 = vmul.f32 %v133, 0.5
    %v390 = vmul.f32 %v134, 0.5
    %v391 = vmul.f32 %v135, 0.5
    %v392 = vmul.f32 %v136, 0.5
    %v393 = vmul.f32 %v137, 0.5
    %v394 = vmul.f32 %v138, 0.5
    %v395 = vmul.f32 %v139, 0.5
    %v396 = vmul.f32 %v140, 0.5
    %v397 = vmul.f32 %v141, 0.5
    %v398 = vmul.f32 %v142, 0.5
    %v399 = vmul.f32 %v143, 0.5
    %v400 = vmul.f32 %v144, 0.5
    %v401 = vmul.f32 %v145, 0.5
    %v402 = vmul.f32 %v146, 0.5
    %v403 = vmul.f32 %v147, 0.5
    %v404 = vmul.f32 %v148, 0.5
    %v405 = vmul.f32 %v149, 0.5
    %v406 = vmul.f32 %v150, 0.5
    %v407 = vmul.f32 %v151, 0.5
    %v408 = vmul.f32 %v152, 0.5
    %v409 = vmul.f32 %v153, 0.5
    %v410 = vmul.f32 %v154, 0.5
    %v411 = vmul.f32 %v155, 0.5
    %v412 = vmul.f32 %v156, 0.5
    %v413 = vmul.f32 %v157, 0.5
    %v414 = vmul.f32 %v158, 0.5
    %v415 = vmul.f32 %v159, 0.5
    %v416 = vmul.f32 %v160, 0.5
    %v417 = vmul.f32 %v161, 0.5
    %v418 = vmul.f32 %v162, 0.5
    %v419 = vmul.f32 %v163, 0.5
    %v420 = vmul.f32 %v164, 0.5
    %v421 = vmul.f32 %v165, 0.5
    %v422 = vmul.f32 %v166, 0.5
    %v423 = vmul.f32 %v167, 0.5
    %v424 = vmul.f32 %v168, 0.5
    %v425 = vmul.f32 %v169, 0.5
    %v426 = vmul.f32 %v170, 0.5
    %v427 = vmul.f32 %v171, 0.5
    %v428 = vmul.f32 %v172, 0.5
    %v429 = vmul.f32 %v173, 0.5
    %v430 = vmul.f32 %v174, 0.5
    %v431 = vmul.f32 %v175, 0.5
    %v432 = vmul.f32 %v176, 0.5
    %v433 = vmul.f32 %v177, 0.5
    %v434 = vmul.f32 %v178, 0.5
    %v435 = vmul.f32 %v179, 0.5
    %v436 = vmul.f32 %v180, 0.5
    %v437 = vmul.f32 %v181, 0.5
    %v438 = vmul.f32 %v182, 0.5
    %v439 = vmul.f32 %v183, 0.5
    %v440 = vmul.f32 %v184, 0.5
    %v441 = vmul.f32 %v185, 0.5
    %v442 = vmul.f32 %v186, 0.5
    %v443 = vmul.f32 %v187, 0.5
    %v444 = vmul.f32 %v188, 0.5
    %v445 = vmul.f32 %v189, 0.5
    %v446 = vmul.f32 %v190, 0.5
    %v447 = vmul.f32 %v191, 0.5
    %v448 = vmul.f32 %v192, 0.5
    %v449 = vmul.f32 %v193, 0.5
    %v450 = vmul.f32 %v194, 0.5
    %v451 = vmul.f32 %v195, 0.5
    %v452 = vmul.f32 %v196, 0.5
    %v453 = vmul.f32 %v197, 0.5
    %v454 = vmul.f32 %v198, 0.5
    %v455 = vmul.f32 %v199, 0.5
    %v456 = vmul.f32 %v200, 0.5
    %v457 = vmul.f32 %v201, 0.5
    %v458 = vmul.f32 %v202, 0.5
    %v459 = vmul.f32 %v203, 0.5
    %v460 = vmul.f32 %v204, 0.5
    %v461 = vmul.f32 %v205, 0.5
    %v462 = vmul.f32 %v206, 0.5
    %v463 = vmul.f32 %v207, 0.5
    %v464 = vmul.f32 %v208, 0.5
    %v465 = vmul.f32 %v209, 0.5
    %v466 = vmul.f32 %v210, 0.5
    %v467 = vmul.f32 %v211, 0.5
    %v468 = vmul.f32 %v212, 0.5
    %v469 = vmul.f32 %v213, 0.5
    %v470 = vmul.f32 %v214, 0.5
    %v471 = vmul.f32 %v215, 0.5
    %v472 = vmul.f32 %v216, 0.5
    %v473 = vmul.f32 %v217, 0.5
    %v474 = vmul.f32 %v218, 0.5
    %v475 = vmul.f32 %v219, 0.5
    %v476 = vmul.f32 %v220, 0.5
    %v477 = vmul.f32 %v221, 0.5
    %v478 = vmul.f32 %v222, 0.5
    %v479 = vmul.f32 %v223, 0.5
    %v480 = vmul.f32 %v224, 0.5
    %v481 = vmul.f32 %v225, 0.5
    %v482 = vmul.f32 %v226, 0.5
    %v483 = vmul.f32 %v227, 0.5
    %v484 = vmul.f32 %v228, 0.5
    %v485 = vmul.f32 %v229, 0.5
    %v486 = vmul.f32 %v230, 0.5
    %v487 = vmul.f32 %v231, 0.5
    %v488 = vmul.f32 %v232, 0.5
    %v489 = vmul.f32 %v233, 0.5
    %v490 = vmul.f32 %v234, 0.5
    %v491 = vmul.f32 %v235, 0.5
    %v492 = vmul.f32 %v236, 0.5
    %v493 = vmul.f32 %v237, 0.5
    %v494 = vmul.f32 %v238, 0.5
    %v495 = vmul.f32 %v239, 0.5
    %v496 = vmul.f32 %v240, 0.5
    %v497 = vmul.f32 %v241, 0.5
    %v498 = vmul.f32 %v242, 0.5
    %v499 = vmul.f32 %v243, 0.5
    %v500 = vmul.f32 %v244, 0.5
    %v501 = vmul.f32 %v245, 0.5
    %v502 = vmul.f32 %v246, 0.5
    %v503 = vmul.f32 %v247, 0.5
    %v504 = vmul.f32 %v248, 0.5
    %v505 = vmul.f32 %v249, 0.5
    %v506 = vmul.f32 %v250, 0.5
    %v507 = vmul.f32 %v251, 0.5
    %v508 = vmul.f32 %v252, 0.5
    %v509 = vmul.f32 %v253, 0.5
    %v510 = vmul.f32 %v254, 0.5
    %v511 = vmul.f32 %v255, 0.5
    %v512 = vmul.f32 %v256, 0.5
    %v513 = vmul.f32 %v257, 0.5
    %v514 = vmul.f32 %v258, 0.5
    %v515 = vmul.f32 %v259, 0.5
    %v516 = vmul.f32 %v260, 0.5
    %v517 = vmul.f32 %v261, 0.5
    %v518 = vmul.f32 %v262, 0.5
    %v519 = vmul.f32 %v263, 0.5
    %v520 = vmul.f32 %v264, 0.5
    %v521 = vmul.f32 %v265, 0.5
    %v522 = vmul.f32 %v266, 0.5
    %v523 = vmul.f32 %v267, 0.5
    %v524 = vmul.f32 %v268, 0.5
    %v525 = vmul.f32 %v269, 0.5
    %v526 = vmul.f32 %v270, 0.5
    %v527 = vmul.f32 %v271, 0.5
    %v528 = vmul.f32 %v272, 0.5
    %v529 = vmul.f32 %v273, 0.5
    %v530 = vmul.f32 %v274, 0.5
    %v531 = vmul.f32 %v275, 0.5
    %v532 = vmul.f32 %v276, 0.5
    %v533 = vmul.f32 %v277, 0.5
    %v534 = vmul.f32 %v278, 0.5
    %v535 = vtanh.pop %v279
    %v536 = vtanh.pop %v280
    %v537 = vtanh.pop %v281
    %v538 = vtanh.pop %v282
    %v539 = vtanh.pop %v283
    %v540 = vtanh.pop %v284
    %v541 = vtanh.pop %v285
    %v542 = vtanh.pop %v286
    %v543 = vtanh.pop %v287
    %v544 = vtanh.pop %v288
    %v545 = vtanh.pop %v289
    %v546 = vtanh.pop %v290
    %v547 = vtanh.pop %v291
    %v548 = vtanh.pop %v292
    %v549 = vtanh.pop %v293
    %v550 = vtanh.pop %v294
    %v551 = vtanh.pop %v295
    %v552 = vtanh.pop %v296
    %v553 = vtanh.pop %v297
    %v554 = vtanh.pop %v298
    %v555 = vtanh.pop %v299
    %v556 = vtanh.pop %v300
    %v557 = vtanh.pop %v301
    %v558 = vtanh.pop %v302
    %v559 = vtanh.pop %v303
    %v560 = vtanh.pop %v304
    %v561 = vtanh.pop %v305
    %v562 = vtanh.pop %v306
    %v563 = vtanh.pop %v307
    %v564 = vtanh.pop %v308
    %v565 = vtanh.pop %v309
    %v566 = vtanh.pop %v310
    %v567 = vtanh.pop %v311
    %v568 = vtanh.pop %v312
    %v569 = vtanh.pop %v313
    %v570 = vtanh.pop %v314
    %v571 = vtanh.pop %v315
    %v572 = vtanh.pop %v316
    %v573 = vtanh.pop %v317
    %v574 = vtanh.pop %v318
    %v575 = vtanh.pop %v319
    %v576 = vtanh.pop %v320
    %v577 = vtanh.pop %v321
    %v578 = vtanh.pop %v322
    %v579 = vtanh.pop %v323
    %v580 = vtanh.pop %v324
    %v581 = vtanh.pop %v325
    %v582 = vtanh.pop %v326
    %v583 = vtanh.pop %v327
    %v584 = vtanh.pop %v328
    %v585 = vtanh.pop %v329
    %v586 = vtanh.pop %v330
    %v587 = vtanh.pop %v331
    %v588 = vtanh.pop %v332
    %v589 = vtanh.pop %v333
    %v590 = vtanh.pop %v334
    %v591 = vtanh.pop %v335
    %v592 = vtanh.pop %v336
    %v593 = vtanh.pop %v337
    %v594 = vtanh.pop %v338
    %v595 = vtanh.pop %v339
    %v596 = vtanh.pop %v340
    %v597 = vtanh.pop %v341
    %v598 = vtanh.pop %v342
    %v599 = vtanh.pop %v343
    %v600 = vtanh.pop %v344
    %v601 = vtanh.pop %v345
    %v602 = vtanh.pop %v346
    %v603 = vtanh.pop %v347
    %v604 = vtanh.pop %v348
    %v605 = vtanh.pop %v349
    %v606 = vtanh.pop %v350
    %v607 = vtanh.pop %v351
    %v608 = vtanh.pop %v352
    %v609 = vtanh.pop %v353
    %v610 = vtanh.pop %v354
    %v611 = vtanh.pop %v355
    %v612 = vtanh.pop %v356
    %v613 = vtanh.pop %v357
    %v614 = vtanh.pop %v358
    %v615 = vtanh.pop %v359
    %v616 = vtanh.pop %v360
    %v617 = vtanh.pop %v361
    %v618 = vtanh.pop %v362
    %v619 = vtanh.pop %v363
    %v620 = vtanh.pop %v364
    %v621 = vtanh.pop %v365
    %v622 = vtanh.pop %v366
    %v623 = vtanh.pop %v367
    %v624 = vtanh.pop %v368
    %v625 = vtanh.pop %v369
    %v626 = vtanh.pop %v370
    %v627 = vtanh.pop %v371
    %v628 = vtanh.pop %v372
    %v629 = vtanh.pop %v373
    %v630 = vtanh.pop %v374
    %v631 = vtanh.pop %v375
    %v632 = vtanh.pop %v376
    %v633 = vtanh.pop %v377
    %v634 = vtanh.pop %v378
    %v635 = vtanh.pop %v379
    %v636 = vtanh.pop %v380
    %v637 = vtanh.pop %v381
    %v638 = vtanh.pop %v382
    %v639 = vtanh.pop %v383
    %v640 = vtanh.pop %v384
    %v641 = vtanh.pop %v385
    %v642 = vtanh.pop %v386
    %v643 = vtanh.pop %v387
    %v644 = vtanh.pop %v388
    %v645 = vtanh.pop %v389
    %v646 = vtanh.pop %v390
    %v647 = vtanh.pop %v391
    %v648 = vtanh.pop %v392
    %v649 = vtanh.pop %v393
    %v650 = vtanh.pop %v394
    %v651 = vtanh.pop %v395
    %v652 = vtanh.pop %v396
    %v653 = vtanh.pop %v397
    %v654 = vtanh.pop %v398
    %v655 = vtanh.pop %v399
    %v656 = vtanh.pop %v400
    %v657 = vtanh.pop %v401
    %v658 = vtanh.pop %v402
    %v659 = vtanh.pop %v403
    %v660 = vtanh.pop %v404
    %v661 = vtanh.pop %v405
    %v662 = vtanh.pop %v406
    %v663 = vtanh.pop %v407
    %v664 = vtanh.pop %v408
    %v665 = vtanh.pop %v409
    %v666 = vtanh.pop %v410
    %v667 = vtanh.pop %v411
    %v668 = vtanh.pop %v412
    %v669 = vtanh.pop %v413
    %v670 = vtanh.pop %v414
    %v671 = vtanh.pop %v415
    %v672 = vtanh.pop %v416
    %v673 = vtanh.pop %v417
    %v674 = vtanh.pop %v418
    %v675 = vtanh.pop %v419
    %v676 = vtanh.pop %v420
    %v677 = vtanh.pop %v421
    %v678 = vtanh.pop %v422
    %v679 = vtanh.pop %v423
    %v680 = vtanh.pop %v424
    %v681 = vtanh.pop %v425
    %v682 = vtanh.pop %v426
    %v683 = vtanh.pop %v427
    %v684 = vtanh.pop %v428
    %v685 = vtanh.pop %v429
    %v686 = vtanh.pop %v430
    %v687 = vtanh.pop %v431
    %v688 = vtanh.pop %v432
    %v689 = vtanh.pop %v433
    %v690 = vtanh.pop %v434
    %v691 = vtanh.pop %v435
    %v692 = vtanh.pop %v436
    %v693 = vtanh.pop %v437
    %v694 = vtanh.pop %v438
    %v695 = vtanh.pop %v439
    %v696 = vtanh.pop %v440
    %v697 = vtanh.pop %v441
    %v698 = vtanh.pop %v442
    %v699 = vtanh.pop %v443
    %v700 = vtanh.pop %v444
    %v701 = vtanh.pop %v445
    %v702 = vtanh.pop %v446
    %v703 = vtanh.pop %v447
    %v704 = vtanh.pop %v448
    %v705 = vtanh.pop %v449
    %v706 = vtanh.pop %v450
    %v707 = vtanh.pop %v451
    %v708 = vtanh.pop %v452
    %v709 = vtanh.pop %v453
    %v710 = vtanh.pop %v454
    %v711 = vtanh.pop %v455
    %v712 = vtanh.pop %v456
    %v713 = vtanh.pop %v457
    %v714 = vtanh.pop %v458
    %v715 = vtanh.pop %v459
    %v716 = vtanh.pop %v460
    %v717 = vtanh.pop %v461
    %v718 = vtanh.pop %v462
    %v719 = vtanh.pop %v463
    %v720 = vtanh.pop %v464
    %v721 = vtanh.pop %v465
    %v722 = vtanh.pop %v466
    %v723 = vtanh.pop %v467
    %v724 = vtanh.pop %v468
    %v725 = vtanh.pop %v469
    %v726 = vtanh.pop %v470
    %v727 = vtanh.pop %v471
    %v728 = vtanh.pop %v472
    %v729 = vtanh.pop %v473
    %v730 = vtanh.pop %v474
    %v731 = vtanh.pop %v475
    %v732 = vtanh.pop %v476
    %v733 = vtanh.pop %v477
    %v734 = vtanh.pop %v478
    %v735 = vtanh.pop %v479
    %v736 = vtanh.pop %v480
    %v737 = vtanh.pop %v481
    %v738 = vtanh.pop %v482
    %v739 = vtanh.pop %v483
    %v740 = vtanh.pop %v484
    %v741 = vtanh.pop %v485
    %v742 = vtanh.pop %v486
    %v743 = vtanh.pop %v487
    %v744 = vtanh.pop %v488
    %v745 = vtanh.pop %v489
    %v746 = vtanh.pop %v490
    %v747 = vtanh.pop %v491
    %v748 = vtanh.pop %v492
    %v749 = vtanh.pop %v493
    %v750 = vtanh.pop %v494
    %v751 = vtanh.pop %v495
    %v752 = vtanh.pop %v496
    %v753 = vtanh.pop %v497
    %v754 = vtanh.pop %v498
    %v755 = vtanh.pop %v499
    %v756 = vtanh.pop %v500
    %v757 = vtanh.pop %v501
    %v758 = vtanh.pop %v502
    %v759 = vtanh.pop %v503
    %v760 = vtanh.pop %v504
    %v761 = vtanh.pop %v505
    %v762 = vtanh.pop %v506
    %v763 = vtanh.pop %v507
    %v764 = vtanh.pop %v508
    %v765 = vtanh.pop %v509
    %v766 = vtanh.pop %v510
    %v767 = vtanh.pop %v511
    %v768 = vtanh.pop %v512
    %v769 = vtanh.pop %v513
    %v770 = vtanh.pop %v514
    %v771 = vtanh.pop %v515
    %v772 = vtanh.pop %v516
    %v773 = vtanh.pop %v517
    %v774 = vtanh.pop %v518
    %v775 = vtanh.pop %v519
    %v776 = vtanh.pop %v520
    %v777 = vtanh.pop %v521
    %v778 = vtanh.pop %v522
    %v779 = vtanh.pop %v523
    %v780 = vtanh.pop %v524
    %v781 = vtanh.pop %v525
    %v782 = vtanh.pop %v526
    %v783 = vtanh.pop %v527
    %v784 = vtanh.pop %v528
    %v785 = vtanh.pop %v529
    %v786 = vtanh.pop %v530
    %v787 = vtanh.pop %v531
    %v788 = vtanh.pop %v532
    %v789 = vtanh.pop %v533
    %v790 = vtanh.pop %v534
    %v791 = vmul.f32 %v535, 0.5
    %v792 = vmul.f32 %v536, 0.5
    %v793 = vmul.f32 %v537, 0.5
    %v794 = vmul.f32 %v538, 0.5
    %v795 = vmul.f32 %v539, 0.5
    %v796 = vmul.f32 %v540, 0.5
    %v797 = vmul.f32 %v541, 0.5
    %v798 = vmul.f32 %v542, 0.5
    %v799 = vmul.f32 %v543, 0.5
    %v800 = vmul.f32 %v544, 0.5
    %v801 = vmul.f32 %v545, 0.5
    %v802 = vmul.f32 %v546, 0.5
    %v803 = vmul.f32 %v547, 0.5
    %v804 = vmul.f32 %v548, 0.5
    %v805 = vmul.f32 %v549, 0.5
    %v806 = vmul.f32 %v550, 0.5
    %v807 = vmul.f32 %v551, 0.5
    %v808 = vmul.f32 %v552, 0.5
    %v809 = vmul.f32 %v553, 0.5
    %v810 = vmul.f32 %v554, 0.5
    %v811 = vmul.f32 %v555, 0.5
    %v812 = vmul.f32 %v556, 0.5
    %v813 = vmul.f32 %v557, 0.5
    %v814 = vmul.f32 %v558, 0.5
    %v815 = vmul.f32 %v559, 0.5
    %v816 = vmul.f32 %v560, 0.5
    %v817 = vmul.f32 %v561, 0.5
    %v818 = vmul.f32 %v562, 0.5
    %v819 = vmul.f32 %v563, 0.5
    %v820 = vmul.f32 %v564, 0.5
    %v821 = vmul.f32 %v565, 0.5
    %v822 = vmul.f32 %v566, 0.5
    %v823 = vmul.f32 %v567, 0.5
    %v824 = vmul.f32 %v568, 0.5
    %v825 = vmul.f32 %v569, 0.5
    %v826 = vmul.f32 %v570, 0.5
    %v827 = vmul.f32 %v571, 0.5
    %v828 = vmul.f32 %v572, 0.5
    %v829 = vmul.f32 %v573, 0.5
    %v830 = vmul.f32 %v574, 0.5
    %v831 = vmul.f32 %v575, 0.5
    %v832 = vmul.f32 %v576, 0.5
    %v833 = vmul.f32 %v577, 0.5
    %v834 = vmul.f32 %v578, 0.5
    %v835 = vmul.f32 %v579, 0.5
    %v836 = vmul.f32 %v580, 0.5
    %v837 = vmul.f32 %v581, 0.5
    %v838 = vmul.f32 %v582, 0.5
    %v839 = vmul.f32 %v583, 0.5
    %v840 = vmul.f32 %v584, 0.5
    %v841 = vmul.f32 %v585, 0.5
    %v842 = vmul.f32 %v586, 0.5
    %v843 = vmul.f32 %v587, 0.5
    %v844 = vmul.f32 %v588, 0.5
    %v845 = vmul.f32 %v589, 0.5
    %v846 = vmul.f32 %v590, 0.5
    %v847 = vmul.f32 %v591, 0.5
    %v848 = vmul.f32 %v592, 0.5
    %v849 = vmul.f32 %v593, 0.5
    %v850 = vmul.f32 %v594, 0.5
    %v851 = vmul.f32 %v595, 0.5
    %v852 = vmul.f32 %v596, 0.5
    %v853 = vmul.f32 %v597, 0.5
    %v854 = vmul.f32 %v598, 0.5
    %v855 = vmul.f32 %v599, 0.5
    %v856 = vmul.f32 %v600, 0.5
    %v857 = vmul.f32 %v601, 0.5
    %v858 = vmul.f32 %v602, 0.5
    %v859 = vmul.f32 %v603, 0.5
    %v860 = vmul.f32 %v604, 0.5
    %v861 = vmul.f32 %v605, 0.5
    %v862 = vmul.f32 %v606, 0.5
    %v863 = vmul.f32 %v607, 0.5
    %v864 = vmul.f32 %v608, 0.5
    %v865 = vmul.f32 %v609, 0.5
    %v866 = vmul.f32 %v610, 0.5
    %v867 = vmul.f32 %v611, 0.5
    %v868 = vmul.f32 %v612, 0.5
    %v869 = vmul.f32 %v613, 0.5
    %v870 = vmul.f32 %v614, 0.5
    %v871 = vmul.f32 %v615, 0.5
    %v872 = vmul.f32 %v616, 0.5
    %v873 = vmul.f32 %v617, 0.5
    %v874 = vmul.f32 %v618, 0.5
    %v875 = vmul.f32 %v619, 0.5
    %v876 = vmul.f32 %v620, 0.5
    %v877 = vmul.f32 %v621, 0.5
    %v878 = vmul.f32 %v622, 0.5
    %v879 = vmul.f32 %v623, 0.5
    %v880 = vmul.f32 %v624, 0.5
    %v881 = vmul.f32 %v625, 0.5
    %v882 = vmul.f32 %v626, 0.5
    %v883 = vmul.f32 %v627, 0.5
    %v884 = vmul.f32 %v628, 0.5
    %v885 = vmul.f32 %v629, 0.5
    %v886 = vmul.f32 %v630, 0.5
    %v887 = vmul.f32 %v631, 0.5
    %v888 = vmul.f32 %v632, 0.5
    %v889 = vmul.f32 %v633, 0.5
    %v890 = vmul.f32 %v634, 0.5
    %v891 = vmul.f32 %v635, 0.5
    %v892 = vmul.f32 %v636, 0.5
    %v893 = vmul.f32 %v637, 0.5
    %v894 = vmul.f32 %v638, 0.5
    %v895 = vmul.f32 %v639, 0.5
    %v896 = vmul.f32 %v640, 0.5
    %v897 = vmul.f32 %v641, 0.5
    %v898 = vmul.f32 %v642, 0.5
    %v899 = vmul.f32 %v643, 0.5
    %v900 = vmul.f32 %v644, 0.5
    %v901 = vmul.f32 %v645, 0.5
    %v902 = vmul.f32 %v646, 0.5
    %v903 = vmul.f32 %v647, 0.5
    %v904 = vmul.f32 %v648, 0.5
    %v905 = vmul.f32 %v649, 0.5
    %v906 = vmul.f32 %v650, 0.5
    %v907 = vmul.f32 %v651, 0.5
    %v908 = vmul.f32 %v652, 0.5
    %v909 = vmul.f32 %v653, 0.5
    %v910 = vmul.f32 %v654, 0.5
    %v911 = vmul.f32 %v655, 0.5
    %v912 = vmul.f32 %v656, 0.5
    %v913 = vmul.f32 %v657, 0.5
    %v914 = vmul.f32 %v658, 0.5
    %v915 = vmul.f32 %v659, 0.5
    %v916 = vmul.f32 %v660, 0.5
    %v917 = vmul.f32 %v661, 0.5
    %v918 = vmul.f32 %v662, 0.5
    %v919 = vmul.f32 %v663, 0.5
    %v920 = vmul.f32 %v664, 0.5
    %v921 = vmul.f32 %v665, 0.5
    %v922 = vmul.f32 %v666, 0.5
    %v923 = vmul.f32 %v667, 0.5
    %v924 = vmul.f32 %v668, 0.5
    %v925 = vmul.f32 %v669, 0.5
    %v926 = vmul.f32 %v670, 0.5
    %v927 = vmul.f32 %v671, 0.5
    %v928 = vmul.f32 %v672, 0.5
    %v929 = vmul.f32 %v673, 0.5
    %v930 = vmul.f32 %v674, 0.5
    %v931 = vmul.f32 %v675, 0.5
    %v932 = vmul.f32 %v676, 0.5
    %v933 = vmul.f32 %v677, 0.5
    %v934 = vmul.f32 %v678, 0.5
    %v935 = vmul.f32 %v679, 0.5
    %v936 = vmul.f32 %v680, 0.5
    %v937 = vmul.f32 %v681, 0.5
    %v938 = vmul.f32 %v682, 0.5
    %v939 = vmul.f32 %v683, 0.5
    %v940 = vmul.f32 %v684, 0.5
    %v941 = vmul.f32 %v685, 0.5
    %v942 = vmul.f32 %v686, 0.5
    %v943 = vmul.f32 %v687, 0.5
    %v944 = vmul.f32 %v688, 0.5
    %v945 = vmul.f32 %v689, 0.5
    %v946 = vmul.f32 %v690, 0.5
    %v947 = vmul.f32 %v691, 0.5
    %v948 = vmul.f32 %v692, 0.5
    %v949 = vmul.f32 %v693, 0.5
    %v950 = vmul.f32 %v694, 0.5
    %v951 = vmul.f32 %v695, 0.5
    %v952 = vmul.f32 %v696, 0.5
    %v953 = vmul.f32 %v697, 0.5
    %v954 = vmul.f32 %v698, 0.5
    %v955 = vmul.f32 %v699, 0.5
    %v956 = vmul.f32 %v700, 0.5
    %v957 = vmul.f32 %v701, 0.5
    %v958 = vmul.f32 %v702, 0.5
    %v959 = vmul.f32 %v703, 0.5
    %v960 = vmul.f32 %v704, 0.5
    %v961 = vmul.f32 %v705, 0.5
    %v962 = vmul.f32 %v706, 0.5
    %v963 = vmul.f32 %v707, 0.5
    %v964 = vmul.f32 %v708, 0.5
    %v965 = vmul.f32 %v709, 0.5
    %v966 = vmul.f32 %v710, 0.5
    %v967 = vmul.f32 %v711, 0.5
    %v968 = vmul.f32 %v712, 0.5
    %v969 = vmul.f32 %v713, 0.5
    %v970 = vmul.f32 %v714, 0.5
    %v971 = vmul.f32 %v715, 0.5
    %v972 = vmul.f32 %v716, 0.5
    %v973 = vmul.f32 %v717, 0.5
    %v974 = vmul.f32 %v718, 0.5
    %v975 = vmul.f32 %v719, 0.5
    %v976 = vmul.f32 %v720, 0.5
    %v977 = vmul.f32 %v721, 0.5
    %v978 = vmul.f32 %v722, 0.5
    %v979 = vmul.f32 %v723, 0.5
    %v980 = vmul.f32 %v724, 0.5
    %v981 = vmul.f32 %v725, 0.5
    %v982 = vmul.f32 %v726, 0.5
    %v983 = vmul.f32 %v727, 0.5
    %v984 = vmul.f32 %v728, 0.5
    %v985 = vmul.f32 %v729, 0.5
    %v986 = vmul.f32 %v730, 0.5
    %v987 = vmul.f32 %v731, 0.5
    %v988 = vmul.f32 %v732, 0.5
    %v989 = vmul.f32 %v733, 0.5
    %v990 = vmul.f32 %v734, 0.5
    %v991 = vmul.f32 %v735, 0.5
    %v992 = vmul.f32 %v736, 0.5
    %v993 = vmul.f32 %v737, 0.5
    %v994 = vmul.f32 %v738, 0.5
    %v995 = vmul.f32 %v739, 0.5
    %v996 = vmul.f32 %v740, 0.5
    %v997 = vmul.f32 %v741, 0.5
    %v998 = vmul.f32 %v742, 0.5
    %v999 = vmul.f32 %v743, 0.5
    %v1000 = vmul.f32 %v744, 0.5
    %v1001 = vmul.f32 %v745, 0.5
    %v1002 = vmul.f32 %v746, 0.5
    %v1003 = vmul.f32 %v747, 0.5
    %v1004 = vmul.f32 %v748, 0.5
    %v1005 = vmul.f32 %v749, 0.5
    %v1006 = vmul.f32 %v750, 0.5
    %v1007 = vmul.f32 %v751, 0.5
    %v1008 = vmul.f32 %v752, 0.5
    %v1009 = vmul.f32 %v753, 0.5
    %v1010 = vmul.f32 %v754, 0.5
    %v1011 = vmul.f32 %v755, 0.5
    %v1012 = vmul.f32 %v756, 0.5
    %v1013 = vmul.f32 %v757, 0.5
    %v1014 = vmul.f32 %v758, 0.5
    %v1015 = vmul.f32 %v759, 0.5
    %v1016 = vmul.f32 %v760, 0.5
    %v1017 = vmul.f32 %v761, 0.5
    %v1018 = vmul.f32 %v762, 0.5
    %v1019 = vmul.f32 %v763, 0.5
    %v1020 = vmul.f32 %v764, 0.5
    %v1021 = vmul.f32 %v765, 0.5
    %v1022 = vmul.f32 %v766, 0.5
    %v1023 = vmul.f32 %v767, 0.5
    %v1024 = vmul.f32 %v768, 0.5
    %v1025 = vmul.f32 %v769, 0.5
    %v1026 = vmul.f32 %v770, 0.5
    %v1027 = vmul.f32 %v771, 0.5
    %v1028 = vmul.f32 %v772, 0.5
    %v1029 = vmul.f32 %v773, 0.5
    %v1030 = vmul.f32 %v774, 0.5
    %v1031 = vmul.f32 %v775, 0.5
    %v1032 = vmul.f32 %v776, 0.5
    %v1033 = vmul.f32 %v777, 0.5
    %v1034 = vmul.f32 %v778, 0.5
    %v1035 = vmul.f32 %v779, 0.5
    %v1036 = vmul.f32 %v780, 0.5
    %v1037 = vmul.f32 %v781, 0.5
    %v1038 = vmul.f32 %v782, 0.5
    %v1039 = vmul.f32 %v783, 0.5
    %v1040 = vmul.f32 %v784, 0.5
    %v1041 = vmul.f32 %v785, 0.5
    %v1042 = vmul.f32 %v786, 0.5
    %v1043 = vmul.f32 %v787, 0.5
    %v1044 = vmul.f32 %v788, 0.5
    %v1045 = vmul.f32 %v789, 0.5
    %v1046 = vmul.f32 %v790, 0.5
    %v1047 = vadd.f32 %v791, 0.5
    %v1048 = vadd.f32 %v792, 0.5
    %v1049 = vadd.f32 %v793, 0.5
    %v1050 = vadd.f32 %v794, 0.5
    %v1051 = vadd.f32 %v795, 0.5
    %v1052 = vadd.f32 %v796, 0.5
    %v1053 = vadd.f32 %v797, 0.5
    %v1054 = vadd.f32 %v798, 0.5
    %v1055 = vadd.f32 %v799, 0.5
    %v1056 = vadd.f32 %v800, 0.5
    %v1057 = vadd.f32 %v801, 0.5
    %v1058 = vadd.f32 %v802, 0.5
    %v1059 = vadd.f32 %v803, 0.5
    %v1060 = vadd.f32 %v804, 0.5
    %v1061 = vadd.f32 %v805, 0.5
    %v1062 = vadd.f32 %v806, 0.5
    %v1063 = vadd.f32 %v807, 0.5
    %v1064 = vadd.f32 %v808, 0.5
    %v1065 = vadd.f32 %v809, 0.5
    %v1066 = vadd.f32 %v810, 0.5
    %v1067 = vadd.f32 %v811, 0.5
    %v1068 = vadd.f32 %v812, 0.5
    %v1069 = vadd.f32 %v813, 0.5
    %v1070 = vadd.f32 %v814, 0.5
    %v1071 = vadd.f32 %v815, 0.5
    %v1072 = vadd.f32 %v816, 0.5
    %v1073 = vadd.f32 %v817, 0.5
    %v1074 = vadd.f32 %v818, 0.5
    %v1075 = vadd.f32 %v819, 0.5
    %v1076 = vadd.f32 %v820, 0.5
    %v1077 = vadd.f32 %v821, 0.5
    %v1078 = vadd.f32 %v822, 0.5
    %v1079 = vadd.f32 %v823, 0.5
    %v1080 = vadd.f32 %v824, 0.5
    %v1081 = vadd.f32 %v825, 0.5
    %v1082 = vadd.f32 %v826, 0.5
    %v1083 = vadd.f32 %v827, 0.5
    %v1084 = vadd.f32 %v828, 0.5
    %v1085 = vadd.f32 %v829, 0.5
    %v1086 = vadd.f32 %v830, 0.5
    %v1087 = vadd.f32 %v831, 0.5
    %v1088 = vadd.f32 %v832, 0.5
    %v1089 = vadd.f32 %v833, 0.5
    %v1090 = vadd.f32 %v834, 0.5
    %v1091 = vadd.f32 %v835, 0.5
    %v1092 = vadd.f32 %v836, 0.5
    %v1093 = vadd.f32 %v837, 0.5
    %v1094 = vadd.f32 %v838, 0.5
    %v1095 = vadd.f32 %v839, 0.5
    %v1096 = vadd.f32 %v840, 0.5
    %v1097 = vadd.f32 %v841, 0.5
    %v1098 = vadd.f32 %v842, 0.5
    %v1099 = vadd.f32 %v843, 0.5
    %v1100 = vadd.f32 %v844, 0.5
    %v1101 = vadd.f32 %v845, 0.5
    %v1102 = vadd.f32 %v846, 0.5
    %v1103 = vadd.f32 %v847, 0.5
    %v1104 = vadd.f32 %v848, 0.5
    %v1105 = vadd.f32 %v849, 0.5
    %v1106 = vadd.f32 %v850, 0.5
    %v1107 = vadd.f32 %v851, 0.5
    %v1108 = vadd.f32 %v852, 0.5
    %v1109 = vadd.f32 %v853, 0.5
    %v1110 = vadd.f32 %v854, 0.5
    %v1111 = vadd.f32 %v855, 0.5
    %v1112 = vadd.f32 %v856, 0.5
    %v1113 = vadd.f32 %v857, 0.5
    %v1114 = vadd.f32 %v858, 0.5
    %v1115 = vadd.f32 %v859, 0.5
    %v1116 = vadd.f32 %v860, 0.5
    %v1117 = vadd.f32 %v861, 0.5
    %v1118 = vadd.f32 %v862, 0.5
    %v1119 = vadd.f32 %v863, 0.5
    %v1120 = vadd.f32 %v864, 0.5
    %v1121 = vadd.f32 %v865, 0.5
    %v1122 = vadd.f32 %v866, 0.5
    %v1123 = vadd.f32 %v867, 0.5
    %v1124 = vadd.f32 %v868, 0.5
    %v1125 = vadd.f32 %v869, 0.5
    %v1126 = vadd.f32 %v870, 0.5
    %v1127 = vadd.f32 %v871, 0.5
    %v1128 = vadd.f32 %v872, 0.5
    %v1129 = vadd.f32 %v873, 0.5
    %v1130 = vadd.f32 %v874, 0.5
    %v1131 = vadd.f32 %v875, 0.5
    %v1132 = vadd.f32 %v876, 0.5
    %v1133 = vadd.f32 %v877, 0.5
    %v1134 = vadd.f32 %v878, 0.5
    %v1135 = vadd.f32 %v879, 0.5
    %v1136 = vadd.f32 %v880, 0.5
    %v1137 = vadd.f32 %v881, 0.5
    %v1138 = vadd.f32 %v882, 0.5
    %v1139 = vadd.f32 %v883, 0.5
    %v1140 = vadd.f32 %v884, 0.5
    %v1141 = vadd.f32 %v885, 0.5
    %v1142 = vadd.f32 %v886, 0.5
    %v1143 = vadd.f32 %v887, 0.5
    %v1144 = vadd.f32 %v888, 0.5
    %v1145 = vadd.f32 %v889, 0.5
    %v1146 = vadd.f32 %v890, 0.5
    %v1147 = vadd.f32 %v891, 0.5
    %v1148 = vadd.f32 %v892, 0.5
    %v1149 = vadd.f32 %v893, 0.5
    %v1150 = vadd.f32 %v894, 0.5
    %v1151 = vadd.f32 %v895, 0.5
    %v1152 = vadd.f32 %v896, 0.5
    %v1153 = vadd.f32 %v897, 0.5
    %v1154 = vadd.f32 %v898, 0.5
    %v1155 = vadd.f32 %v899, 0.5
    %v1156 = vadd.f32 %v900, 0.5
    %v1157 = vadd.f32 %v901, 0.5
    %v1158 = vadd.f32 %v902, 0.5
    %v1159 = vadd.f32 %v903, 0.5
    %v1160 = vadd.f32 %v904, 0.5
    %v1161 = vadd.f32 %v905, 0.5
    %v1162 = vadd.f32 %v906, 0.5
    %v1163 = vadd.f32 %v907, 0.5
    %v1164 = vadd.f32 %v908, 0.5
    %v1165 = vadd.f32 %v909, 0.5
    %v1166 = vadd.f32 %v910, 0.5
    %v1167 = vadd.f32 %v911, 0.5
    %v1168 = vadd.f32 %v912, 0.5
    %v1169 = vadd.f32 %v913, 0.5
    %v1170 = vadd.f32 %v914, 0.5
    %v1171 = vadd.f32 %v915, 0.5
    %v1172 = vadd.f32 %v916, 0.5
    %v1173 = vadd.f32 %v917, 0.5
    %v1174 = vadd.f32 %v918, 0.5
    %v1175 = vadd.f32 %v919, 0.5
    %v1176 = vadd.f32 %v920, 0.5
    %v1177 = vadd.f32 %v921, 0.5
    %v1178 = vadd.f32 %v922, 0.5
    %v1179 = vadd.f32 %v923, 0.5
    %v1180 = vadd.f32 %v924, 0.5
    %v1181 = vadd.f32 %v925, 0.5
    %v1182 = vadd.f32 %v926, 0.5
    %v1183 = vadd.f32 %v927, 0.5
    %v1184 = vadd.f32 %v928, 0.5
    %v1185 = vadd.f32 %v929, 0.5
    %v1186 = vadd.f32 %v930, 0.5
    %v1187 = vadd.f32 %v931, 0.5
    %v1188 = vadd.f32 %v932, 0.5
    %v1189 = vadd.f32 %v933, 0.5
    %v1190 = vadd.f32 %v934, 0.5
    %v1191 = vadd.f32 %v935, 0.5
    %v1192 = vadd.f32 %v936, 0.5
    %v1193 = vadd.f32 %v937, 0.5
    %v1194 = vadd.f32 %v938, 0.5
    %v1195 = vadd.f32 %v939, 0.5
    %v1196 = vadd.f32 %v940, 0.5
    %v1197 = vadd.f32 %v941, 0.5
    %v1198 = vadd.f32 %v942, 0.5
    %v1199 = vadd.f32 %v943, 0.5
    %v1200 = vadd.f32 %v944, 0.5
    %v1201 = vadd.f32 %v945, 0.5
    %v1202 = vadd.f32 %v946, 0.5
    %v1203 = vadd.f32 %v947, 0.5
    %v1204 = vadd.f32 %v948, 0.5
    %v1205 = vadd.f32 %v949, 0.5
    %v1206 = vadd.f32 %v950, 0.5
    %v1207 = vadd.f32 %v951, 0.5
    %v1208 = vadd.f32 %v952, 0.5
    %v1209 = vadd.f32 %v953, 0.5
    %v1210 = vadd.f32 %v954, 0.5
    %v1211 = vadd.f32 %v955, 0.5
    %v1212 = vadd.f32 %v956, 0.5
    %v1213 = vadd.f32 %v957, 0.5
    %v1214 = vadd.f32 %v958, 0.5
    %v1215 = vadd.f32 %v959, 0.5
    %v1216 = vadd.f32 %v960, 0.5
    %v1217 = vadd.f32 %v961, 0.5
    %v1218 = vadd.f32 %v962, 0.5
    %v1219 = vadd.f32 %v963, 0.5
    %v1220 = vadd.f32 %v964, 0.5
    %v1221 = vadd.f32 %v965, 0.5
    %v1222 = vadd.f32 %v966, 0.5
    %v1223 = vadd.f32 %v967, 0.5
    %v1224 = vadd.f32 %v968, 0.5
    %v1225 = vadd.f32 %v969, 0.5
    %v1226 = vadd.f32 %v970, 0.5
    %v1227 = vadd.f32 %v971, 0.5
    %v1228 = vadd.f32 %v972, 0.5
    %v1229 = vadd.f32 %v973, 0.5
    %v1230 = vadd.f32 %v974, 0.5
    %v1231 = vadd.f32 %v975, 0.5
    %v1232 = vadd.f32 %v976, 0.5
    %v1233 = vadd.f32 %v977, 0.5
    %v1234 = vadd.f32 %v978, 0.5
    %v1235 = vadd.f32 %v979, 0.5
    %v1236 = vadd.f32 %v980, 0.5
    %v1237 = vadd.f32 %v981, 0.5
    %v1238 = vadd.f32 %v982, 0.5
    %v1239 = vadd.f32 %v983, 0.5
    %v1240 = vadd.f32 %v984, 0.5
    %v1241 = vadd.f32 %v985, 0.5
    %v1242 = vadd.f32 %v986, 0.5
    %v1243 = vadd.f32 %v987, 0.5
    %v1244 = vadd.f32 %v988, 0.5
    %v1245 = vadd.f32 %v989, 0.5
    %v1246 = vadd.f32 %v990, 0.5
    %v1247 = vadd.f32 %v991, 0.5
    %v1248 = vadd.f32 %v992, 0.5
    %v1249 = vadd.f32 %v993, 0.5
    %v1250 = vadd.f32 %v994, 0.5
    %v1251 = vadd.f32 %v995, 0.5
    %v1252 = vadd.f32 %v996, 0.5
    %v1253 = vadd.f32 %v997, 0.5
    %v1254 = vadd.f32 %v998, 0.5
    %v1255 = vadd.f32 %v999, 0.5
    %v1256 = vadd.f32 %v1000, 0.5
    %v1257 = vadd.f32 %v1001, 0.5
    %v1258 = vadd.f32 %v1002, 0.5
    %v1259 = vadd.f32 %v1003, 0.5
    %v1260 = vadd.f32 %v1004, 0.5
    %v1261 = vadd.f32 %v1005, 0.5
    %v1262 = vadd.f32 %v1006, 0.5
    %v1263 = vadd.f32 %v1007, 0.5
    %v1264 = vadd.f32 %v1008, 0.5
    %v1265 = vadd.f32 %v1009, 0.5
    %v1266 = vadd.f32 %v1010, 0.5
    %v1267 = vadd.f32 %v1011, 0.5
    %v1268 = vadd.f32 %v1012, 0.5
    %v1269 = vadd.f32 %v1013, 0.5
    %v1270 = vadd.f32 %v1014, 0.5
    %v1271 = vadd.f32 %v1015, 0.5
    %v1272 = vadd.f32 %v1016, 0.5
    %v1273 = vadd.f32 %v1017, 0.5
    %v1274 = vadd.f32 %v1018, 0.5
    %v1275 = vadd.f32 %v1019, 0.5
    %v1276 = vadd.f32 %v1020, 0.5
    %v1277 = vadd.f32 %v1021, 0.5
    %v1278 = vadd.f32 %v1022, 0.5
    %v1279 = vadd.f32 %v1023, 0.5
    %v1280 = vadd.f32 %v1024, 0.5
    %v1281 = vadd.f32 %v1025, 0.5
    %v1282 = vadd.f32 %v1026, 0.5
    %v1283 = vadd.f32 %v1027, 0.5
    %v1284 = vadd.f32 %v1028, 0.5
    %v1285 = vadd.f32 %v1029, 0.5
    %v1286 = vadd.f32 %v1030, 0.5
    %v1287 = vadd.f32 %v1031, 0.5
    %v1288 = vadd.f32 %v1032, 0.5
    %v1289 = vadd.f32 %v1033, 0.5
    %v1290 = vadd.f32 %v1034, 0.5
    %v1291 = vadd.f32 %v1035, 0.5
    %v1292 = vadd.f32 %v1036, 0.5
    %v1293 = vadd.f32 %v1037, 0.5
    %v1294 = vadd.f32 %v1038, 0.5
    %v1295 = vadd.f32 %v1039, 0.5
    %v1296 = vadd.f32 %v1040, 0.5
    %v1297 = vadd.f32 %v1041, 0.5
    %v1298 = vadd.f32 %v1042, 0.5
    %v1299 = vadd.f32 %v1043, 0.5
    %v1300 = vadd.f32 %v1044, 0.5
    %v1301 = vadd.f32 %v1045, 0.5
    %v1302 = vadd.f32 %v1046, 0.5
    %v1303 = vmul.f32 %v23, %v1047
    %v1304 = vmul.f32 %v24, %v1048
    %v1305 = vmul.f32 %v25, %v1049
    %v1306 = vmul.f32 %v26, %v1050
    %v1307 = vmul.f32 %v27, %v1051
    %v1308 = vmul.f32 %v28, %v1052
    %v1309 = vmul.f32 %v29, %v1053
    %v1310 = vmul.f32 %v30, %v1054
    %v1311 = vmul.f32 %v31, %v1055
    %v1312 = vmul.f32 %v32, %v1056
    %v1313 = vmul.f32 %v33, %v1057
    %v1314 = vmul.f32 %v34, %v1058
    %v1315 = vmul.f32 %v35, %v1059
    %v1316 = vmul.f32 %v36, %v1060
    %v1317 = vmul.f32 %v37, %v1061
    %v1318 = vmul.f32 %v38, %v1062
    %v1319 = vmul.f32 %v39, %v1063
    %v1320 = vmul.f32 %v40, %v1064
    %v1321 = vmul.f32 %v41, %v1065
    %v1322 = vmul.f32 %v42, %v1066
    %v1323 = vmul.f32 %v43, %v1067
    %v1324 = vmul.f32 %v44, %v1068
    %v1325 = vmul.f32 %v45, %v1069
    %v1326 = vmul.f32 %v46, %v1070
    %v1327 = vmul.f32 %v47, %v1071
    %v1328 = vmul.f32 %v48, %v1072
    %v1329 = vmul.f32 %v49, %v1073
    %v1330 = vmul.f32 %v50, %v1074
    %v1331 = vmul.f32 %v51, %v1075
    %v1332 = vmul.f32 %v52, %v1076
    %v1333 = vmul.f32 %v53, %v1077
    %v1334 = vmul.f32 %v54, %v1078
    %v1335 = vmul.f32 %v55, %v1079
    %v1336 = vmul.f32 %v56, %v1080
    %v1337 = vmul.f32 %v57, %v1081
    %v1338 = vmul.f32 %v58, %v1082
    %v1339 = vmul.f32 %v59, %v1083
    %v1340 = vmul.f32 %v60, %v1084
    %v1341 = vmul.f32 %v61, %v1085
    %v1342 = vmul.f32 %v62, %v1086
    %v1343 = vmul.f32 %v63, %v1087
    %v1344 = vmul.f32 %v64, %v1088
    %v1345 = vmul.f32 %v65, %v1089
    %v1346 = vmul.f32 %v66, %v1090
    %v1347 = vmul.f32 %v67, %v1091
    %v1348 = vmul.f32 %v68, %v1092
    %v1349 = vmul.f32 %v69, %v1093
    %v1350 = vmul.f32 %v70, %v1094
    %v1351 = vmul.f32 %v71, %v1095
    %v1352 = vmul.f32 %v72, %v1096
    %v1353 = vmul.f32 %v73, %v1097
    %v1354 = vmul.f32 %v74, %v1098
    %v1355 = vmul.f32 %v75, %v1099
    %v1356 = vmul.f32 %v76, %v1100
    %v1357 = vmul.f32 %v77, %v1101
    %v1358 = vmul.f32 %v78, %v1102
    %v1359 = vmul.f32 %v79, %v1103
    %v1360 = vmul.f32 %v80, %v1104
    %v1361 = vmul.f32 %v81, %v1105
    %v1362 = vmul.f32 %v82, %v1106
    %v1363 = vmul.f32 %v83, %v1107
    %v1364 = vmul.f32 %v84, %v1108
    %v1365 = vmul.f32 %v85, %v1109
    %v1366 = vmul.f32 %v86, %v1110
    %v1367 = vmul.f32 %v87, %v1111
    %v1368 = vmul.f32 %v88, %v1112
    %v1369 = vmul.f32 %v89, %v1113
    %v1370 = vmul.f32 %v90, %v1114
    %v1371 = vmul.f32 %v91, %v1115
    %v1372 = vmul.f32 %v92, %v1116
    %v1373 = vmul.f32 %v93, %v1117
    %v1374 = vmul.f32 %v94, %v1118
    %v1375 = vmul.f32 %v95, %v1119
    %v1376 = vmul.f32 %v96, %v1120
    %v1377 = vmul.f32 %v97, %v1121
    %v1378 = vmul.f32 %v98, %v1122
    %v1379 = vmul.f32 %v99, %v1123
    %v1380 = vmul.f32 %v100, %v1124
    %v1381 = vmul.f32 %v101, %v1125
    %v1382 = vmul.f32 %v102, %v1126
    %v1383 = vmul.f32 %v103, %v1127
    %v1384 = vmul.f32 %v104, %v1128
    %v1385 = vmul.f32 %v105, %v1129
    %v1386 = vmul.f32 %v106, %v1130
    %v1387 = vmul.f32 %v107, %v1131
    %v1388 = vmul.f32 %v108, %v1132
    %v1389 = vmul.f32 %v109, %v1133
    %v1390 = vmul.f32 %v110, %v1134
    %v1391 = vmul.f32 %v111, %v1135
    %v1392 = vmul.f32 %v112, %v1136
    %v1393 = vmul.f32 %v113, %v1137
    %v1394 = vmul.f32 %v114, %v1138
    %v1395 = vmul.f32 %v115, %v1139
    %v1396 = vmul.f32 %v116, %v1140
    %v1397 = vmul.f32 %v117, %v1141
    %v1398 = vmul.f32 %v118, %v1142
    %v1399 = vmul.f32 %v119, %v1143
    %v1400 = vmul.f32 %v120, %v1144
    %v1401 = vmul.f32 %v121, %v1145
    %v1402 = vmul.f32 %v122, %v1146
    %v1403 = vmul.f32 %v123, %v1147
    %v1404 = vmul.f32 %v124, %v1148
    %v1405 = vmul.f32 %v125, %v1149
    %v1406 = vmul.f32 %v126, %v1150
    %v1407 = vmul.f32 %v127, %v1151
    %v1408 = vmul.f32 %v128, %v1152
    %v1409 = vmul.f32 %v129, %v1153
    %v1410 = vmul.f32 %v130, %v1154
    %v1411 = vmul.f32 %v131, %v1155
    %v1412 = vmul.f32 %v132, %v1156
    %v1413 = vmul.f32 %v133, %v1157
    %v1414 = vmul.f32 %v134, %v1158
    %v1415 = vmul.f32 %v135, %v1159
    %v1416 = vmul.f32 %v136, %v1160
    %v1417 = vmul.f32 %v137, %v1161
    %v1418 = vmul.f32 %v138, %v1162
    %v1419 = vmul.f32 %v139, %v1163
    %v1420 = vmul.f32 %v140, %v1164
    %v1421 = vmul.f32 %v141, %v1165
    %v1422 = vmul.f32 %v142, %v1166
    %v1423 = vmul.f32 %v143, %v1167
    %v1424 = vmul.f32 %v144, %v1168
    %v1425 = vmul.f32 %v145, %v1169
    %v1426 = vmul.f32 %v146, %v1170
    %v1427 = vmul.f32 %v147, %v1171
    %v1428 = vmul.f32 %v148, %v1172
    %v1429 = vmul.f32 %v149, %v1173
    %v1430 = vmul.f32 %v150, %v1174
    %v1431 = vmul.f32 %v151, %v1175
    %v1432 = vmul.f32 %v152, %v1176
    %v1433 = vmul.f32 %v153, %v1177
    %v1434 = vmul.f32 %v154, %v1178
    %v1435 = vmul.f32 %v155, %v1179
    %v1436 = vmul.f32 %v156, %v1180
    %v1437 = vmul.f32 %v157, %v1181
    %v1438 = vmul.f32 %v158, %v1182
    %v1439 = vmul.f32 %v159, %v1183
    %v1440 = vmul.f32 %v160, %v1184
    %v1441 = vmul.f32 %v161, %v1185
    %v1442 = vmul.f32 %v162, %v1186
    %v1443 = vmul.f32 %v163, %v1187
    %v1444 = vmul.f32 %v164, %v1188
    %v1445 = vmul.f32 %v165, %v1189
    %v1446 = vmul.f32 %v166, %v1190
    %v1447 = vmul.f32 %v167, %v1191
    %v1448 = vmul.f32 %v168, %v1192
    %v1449 = vmul.f32 %v169, %v1193
    %v1450 = vmul.f32 %v170, %v1194
    %v1451 = vmul.f32 %v171, %v1195
    %v1452 = vmul.f32 %v172, %v1196
    %v1453 = vmul.f32 %v173, %v1197
    %v1454 = vmul.f32 %v174, %v1198
    %v1455 = vmul.f32 %v175, %v1199
    %v1456 = vmul.f32 %v176, %v1200
    %v1457 = vmul.f32 %v177, %v1201
    %v1458 = vmul.f32 %v178, %v1202
    %v1459 = vmul.f32 %v179, %v1203
    %v1460 = vmul.f32 %v180, %v1204
    %v1461 = vmul.f32 %v181, %v1205
    %v1462 = vmul.f32 %v182, %v1206
    %v1463 = vmul.f32 %v183, %v1207
    %v1464 = vmul.f32 %v184, %v1208
    %v1465 = vmul.f32 %v185, %v1209
    %v1466 = vmul.f32 %v186, %v1210
    %v1467 = vmul.f32 %v187, %v1211
    %v1468 = vmul.f32 %v188, %v1212
    %v1469 = vmul.f32 %v189, %v1213
    %v1470 = vmul.f32 %v190, %v1214
    %v1471 = vmul.f32 %v191, %v1215
    %v1472 = vmul.f32 %v192, %v1216
    %v1473 = vmul.f32 %v193, %v1217
    %v1474 = vmul.f32 %v194, %v1218
    %v1475 = vmul.f32 %v195, %v1219
    %v1476 = vmul.f32 %v196, %v1220
    %v1477 = vmul.f32 %v197, %v1221
    %v1478 = vmul.f32 %v198, %v1222
    %v1479 = vmul.f32 %v199, %v1223
    %v1480 = vmul.f32 %v200, %v1224
    %v1481 = vmul.f32 %v201, %v1225
    %v1482 = vmul.f32 %v202, %v1226
    %v1483 = vmul.f32 %v203, %v1227
    %v1484 = vmul.f32 %v204, %v1228
    %v1485 = vmul.f32 %v205, %v1229
    %v1486 = vmul.f32 %v206, %v1230
    %v1487 = vmul.f32 %v207, %v1231
    %v1488 = vmul.f32 %v208, %v1232
    %v1489 = vmul.f32 %v209, %v1233
    %v1490 = vmul.f32 %v210, %v1234
    %v1491 = vmul.f32 %v211, %v1235
    %v1492 = vmul.f32 %v212, %v1236
    %v1493 = vmul.f32 %v213, %v1237
    %v1494 = vmul.f32 %v214, %v1238
    %v1495 = vmul.f32 %v215, %v1239
    %v1496 = vmul.f32 %v216, %v1240
    %v1497 = vmul.f32 %v217, %v1241
    %v1498 = vmul.f32 %v218, %v1242
    %v1499 = vmul.f32 %v219, %v1243
    %v1500 = vmul.f32 %v220, %v1244
    %v1501 = vmul.f32 %v221, %v1245
    %v1502 = vmul.f32 %v222, %v1246
    %v1503 = vmul.f32 %v223, %v1247
    %v1504 = vmul.f32 %v224, %v1248
    %v1505 = vmul.f32 %v225, %v1249
    %v1506 = vmul.f32 %v226, %v1250
    %v1507 = vmul.f32 %v227, %v1251
    %v1508 = vmul.f32 %v228, %v1252
    %v1509 = vmul.f32 %v229, %v1253
    %v1510 = vmul.f32 %v230, %v1254
    %v1511 = vmul.f32 %v231, %v1255
    %v1512 = vmul.f32 %v232, %v1256
    %v1513 = vmul.f32 %v233, %v1257
    %v1514 = vmul.f32 %v234, %v1258
    %v1515 = vmul.f32 %v235, %v1259
    %v1516 = vmul.f32 %v236, %v1260
    %v1517 = vmul.f32 %v237, %v1261
    %v1518 = vmul.f32 %v238, %v1262
    %v1519 = vmul.f32 %v239, %v1263
    %v1520 = vmul.f32 %v240, %v1264
    %v1521 = vmul.f32 %v241, %v1265
    %v1522 = vmul.f32 %v242, %v1266
    %v1523 = vmul.f32 %v243, %v1267
    %v1524 = vmul.f32 %v244, %v1268
    %v1525 = vmul.f32 %v245, %v1269
    %v1526 = vmul.f32 %v246, %v1270
    %v1527 = vmul.f32 %v247, %v1271
    %v1528 = vmul.f32 %v248, %v1272
    %v1529 = vmul.f32 %v249, %v1273
    %v1530 = vmul.f32 %v250, %v1274
    %v1531 = vmul.f32 %v251, %v1275
    %v1532 = vmul.f32 %v252, %v1276
    %v1533 = vmul.f32 %v253, %v1277
    %v1534 = vmul.f32 %v254, %v1278
    %v1535 = vmul.f32 %v255, %v1279
    %v1536 = vmul.f32 %v256, %v1280
    %v1537 = vmul.f32 %v257, %v1281
    %v1538 = vmul.f32 %v258, %v1282
    %v1539 = vmul.f32 %v259, %v1283
    %v1540 = vmul.f32 %v260, %v1284
    %v1541 = vmul.f32 %v261, %v1285
    %v1542 = vmul.f32 %v262, %v1286
    %v1543 = vmul.f32 %v263, %v1287
    %v1544 = vmul.f32 %v264, %v1288
    %v1545 = vmul.f32 %v265, %v1289
    %v1546 = vmul.f32 %v266, %v1290
    %v1547 = vmul.f32 %v267, %v1291
    %v1548 = vmul.f32 %v268, %v1292
    %v1549 = vmul.f32 %v269, %v1293
    %v1550 = vmul.f32 %v270, %v1294
    %v1551 = vmul.f32 %v271, %v1295
    %v1552 = vmul.f32 %v272, %v1296
    %v1553 = vmul.f32 %v273, %v1297
    %v1554 = vmul.f32 %v274, %v1298
    %v1555 = vmul.f32 %v275, %v1299
    %v1556 = vmul.f32 %v276, %v1300
    %v1557 = vmul.f32 %v277, %v1301
    %v1558 = vmul.f32 %v278, %v1302
    %1559 = vst [vmem:[#allocation5] sm:$0xff] %v1303
    %1560 = vst [vmem:[#allocation5 + $0x8] sm:$0xff] %v1304
    %1561 = vst [vmem:[#allocation5 + $0x10] sm:$0xff] %v1305
    %1562 = vst [vmem:[#allocation5 + $0x18] sm:$0xff] %v1306
    %1563 = vst [vmem:[#allocation5 + $0x20] sm:$0xff] %v1307
    %1564 = vst [vmem:[#allocation5 + $0x28] sm:$0xff] %v1308
    %1565 = vst [vmem:[#allocation5 + $0x30] sm:$0xff] %v1309
    %1566 = vst [vmem:[#allocation5 + $0x38] sm:$0xff] %v1310
    %1567 = vst [vmem:[#allocation5 + $0x40] sm:$0xff] %v1311
    %1568 = vst [vmem:[#allocation5 + $0x48] sm:$0xff] %v1312
    %1569 = vst [vmem:[#allocation5 + $0x50] sm:$0xff] %v1313
    %1570 = vst [vmem:[#allocation5 + $0x58] sm:$0xff] %v1314
    %1571 = vst [vmem:[#allocation5 + $0x60] sm:$0xff] %v1315
    %1572 = vst [vmem:[#allocation5 + $0x68] sm:$0xff] %v1316
    %1573 = vst [vmem:[#allocation5 + $0x70] sm:$0xff] %v1317
    %1574 = vst [vmem:[#allocation5 + $0x78] sm:$0xff] %v1318
    %1575 = vst [vmem:[#allocation5 + $0x80] sm:$0xff] %v1319
    %1576 = vst [vmem:[#allocation5 + $0x88] sm:$0xff] %v1320
    %1577 = vst [vmem:[#allocation5 + $0x90] sm:$0xff] %v1321
    %1578 = vst [vmem:[#allocation5 + $0x98] sm:$0xff] %v1322
    %1579 = vst [vmem:[#allocation5 + $0xa0] sm:$0xff] %v1323
    %1580 = vst [vmem:[#allocation5 + $0xa8] sm:$0xff] %v1324
    %1581 = vst [vmem:[#allocation5 + $0xb0] sm:$0xff] %v1325
    %1582 = vst [vmem:[#allocation5 + $0xb8] sm:$0xff] %v1326
    %1583 = vst [vmem:[#allocation5 + $0xc0] sm:$0xff] %v1327
    %1584 = vst [vmem:[#allocation5 + $0xc8] sm:$0xff] %v1328
    %1585 = vst [vmem:[#allocation5 + $0xd0] sm:$0xff] %v1329
    %1586 = vst [vmem:[#allocation5 + $0xd8] sm:$0xff] %v1330
    %1587 = vst [vmem:[#allocation5 + $0xe0] sm:$0xff] %v1331
    %1588 = vst [vmem:[#allocation5 + $0xe8] sm:$0xff] %v1332
    %1589 = vst [vmem:[#allocation5 + $0xf0] sm:$0xff] %v1333
    %1590 = vst [vmem:[#allocation5 + $0xf8] sm:$0xff] %v1334
    %1591 = vst [vmem:[#allocation5 + $0x100] sm:$0xff] %v1335
    %1592 = vst [vmem:[#allocation5 + $0x108] sm:$0xff] %v1336
    %1593 = vst [vmem:[#allocation5 + $0x110] sm:$0xff] %v1337
    %1594 = vst [vmem:[#allocation5 + $0x118] sm:$0xff] %v1338
    %1595 = vst [vmem:[#allocation5 + $0x120] sm:$0xff] %v1339
    %1596 = vst [vmem:[#allocation5 + $0x128] sm:$0xff] %v1340
    %1597 = vst [vmem:[#allocation5 + $0x130] sm:$0xff] %v1341
    %1598 = vst [vmem:[#allocation5 + $0x138] sm:$0xff] %v1342
    %1599 = vst [vmem:[#allocation5 + $0x140] sm:$0xff] %v1343
    %1600 = vst [vmem:[#allocation5 + $0x148] sm:$0xff] %v1344
    %1601 = vst [vmem:[#allocation5 + $0x150] sm:$0xff] %v1345
    %1602 = vst [vmem:[#allocation5 + $0x158] sm:$0xff] %v1346
    %1603 = vst [vmem:[#allocation5 + $0x160] sm:$0xff] %v1347
    %1604 = vst [vmem:[#allocation5 + $0x168] sm:$0xff] %v1348
    %1605 = vst [vmem:[#allocation5 + $0x170] sm:$0xff] %v1349
    %1606 = vst [vmem:[#allocation5 + $0x178] sm:$0xff] %v1350
    %1607 = vst [vmem:[#allocation5 + $0x180] sm:$0xff] %v1351
    %1608 = vst [vmem:[#allocation5 + $0x188] sm:$0xff] %v1352
    %1609 = vst [vmem:[#allocation5 + $0x190] sm:$0xff] %v1353
    %1610 = vst [vmem:[#allocation5 + $0x198] sm:$0xff] %v1354
    %1611 = vst [vmem:[#allocation5 + $0x1a0] sm:$0xff] %v1355
    %1612 = vst [vmem:[#allocation5 + $0x1a8] sm:$0xff] %v1356
    %1613 = vst [vmem:[#allocation5 + $0x1b0] sm:$0xff] %v1357
    %1614 = vst [vmem:[#allocation5 + $0x1b8] sm:$0xff] %v1358
    %1615 = vst [vmem:[#allocation5 + $0x1c0] sm:$0xff] %v1359
    %1616 = vst [vmem:[#allocation5 + $0x1c8] sm:$0xff] %v1360
    %1617 = vst [vmem:[#allocation5 + $0x1d0] sm:$0xff] %v1361
    %1618 = vst [vmem:[#allocation5 + $0x1d8] sm:$0xff] %v1362
    %1619 = vst [vmem:[#allocation5 + $0x1e0] sm:$0xff] %v1363
    %1620 = vst [vmem:[#allocation5 + $0x1e8] sm:$0xff] %v1364
    %1621 = vst [vmem:[#allocation5 + $0x1f0] sm:$0xff] %v1365
    %1622 = vst [vmem:[#allocation5 + $0x1f8] sm:$0xff] %v1366
    %1623 = vst [vmem:[#allocation5 + $0x200] sm:$0xff] %v1367
    %1624 = vst [vmem:[#allocation5 + $0x208] sm:$0xff] %v1368
    %1625 = vst [vmem:[#allocation5 + $0x210] sm:$0xff] %v1369
    %1626 = vst [vmem:[#allocation5 + $0x218] sm:$0xff] %v1370
    %1627 = vst [vmem:[#allocation5 + $0x220] sm:$0xff] %v1371
    %1628 = vst [vmem:[#allocation5 + $0x228] sm:$0xff] %v1372
    %1629 = vst [vmem:[#allocation5 + $0x230] sm:$0xff] %v1373
    %1630 = vst [vmem:[#allocation5 + $0x238] sm:$0xff] %v1374
    %1631 = vst [vmem:[#allocation5 + $0x240] sm:$0xff] %v1375
    %1632 = vst [vmem:[#allocation5 + $0x248] sm:$0xff] %v1376
    %1633 = vst [vmem:[#allocation5 + $0x250] sm:$0xff] %v1377
    %1634 = vst [vmem:[#allocation5 + $0x258] sm:$0xff] %v1378
    %1635 = vst [vmem:[#allocation5 + $0x260] sm:$0xff] %v1379
    %1636 = vst [vmem:[#allocation5 + $0x268] sm:$0xff] %v1380
    %1637 = vst [vmem:[#allocation5 + $0x270] sm:$0xff] %v1381
    %1638 = vst [vmem:[#allocation5 + $0x278] sm:$0xff] %v1382
    %1639 = vst [vmem:[#allocation5 + $0x280] sm:$0xff] %v1383
    %1640 = vst [vmem:[#allocation5 + $0x288] sm:$0xff] %v1384
    %1641 = vst [vmem:[#allocation5 + $0x290] sm:$0xff] %v1385
    %1642 = vst [vmem:[#allocation5 + $0x298] sm:$0xff] %v1386
    %1643 = vst [vmem:[#allocation5 + $0x2a0] sm:$0xff] %v1387
    %1644 = vst [vmem:[#allocation5 + $0x2a8] sm:$0xff] %v1388
    %1645 = vst [vmem:[#allocation5 + $0x2b0] sm:$0xff] %v1389
    %1646 = vst [vmem:[#allocation5 + $0x2b8] sm:$0xff] %v1390
    %1647 = vst [vmem:[#allocation5 + $0x2c0] sm:$0xff] %v1391
    %1648 = vst [vmem:[#allocation5 + $0x2c8] sm:$0xff] %v1392
    %1649 = vst [vmem:[#allocation5 + $0x2d0] sm:$0xff] %v1393
    %1650 = vst [vmem:[#allocation5 + $0x2d8] sm:$0xff] %v1394
    %1651 = vst [vmem:[#allocation5 + $0x2e0] sm:$0xff] %v1395
    %1652 = vst [vmem:[#allocation5 + $0x2e8] sm:$0xff] %v1396
    %1653 = vst [vmem:[#allocation5 + $0x2f0] sm:$0xff] %v1397
    %1654 = vst [vmem:[#allocation5 + $0x2f8] sm:$0xff] %v1398
    %1655 = vst [vmem:[#allocation5 + $0x300] sm:$0xff] %v1399
    %1656 = vst [vmem:[#allocation5 + $0x308] sm:$0xff] %v1400
    %1657 = vst [vmem:[#allocation5 + $0x310] sm:$0xff] %v1401
    %1658 = vst [vmem:[#allocation5 + $0x318] sm:$0xff] %v1402
    %1659 = vst [vmem:[#allocation5 + $0x320] sm:$0xff] %v1403
    %1660 = vst [vmem:[#allocation5 + $0x328] sm:$0xff] %v1404
    %1661 = vst [vmem:[#allocation5 + $0x330] sm:$0xff] %v1405
    %1662 = vst [vmem:[#allocation5 + $0x338] sm:$0xff] %v1406
    %1663 = vst [vmem:[#allocation5 + $0x340] sm:$0xff] %v1407
    %1664 = vst [vmem:[#allocation5 + $0x348] sm:$0xff] %v1408
    %1665 = vst [vmem:[#allocation5 + $0x350] sm:$0xff] %v1409
    %1666 = vst [vmem:[#allocation5 + $0x358] sm:$0xff] %v1410
    %1667 = vst [vmem:[#allocation5 + $0x360] sm:$0xff] %v1411
    %1668 = vst [vmem:[#allocation5 + $0x368] sm:$0xff] %v1412
    %1669 = vst [vmem:[#allocation5 + $0x370] sm:$0xff] %v1413
    %1670 = vst [vmem:[#allocation5 + $0x378] sm:$0xff] %v1414
    %1671 = vst [vmem:[#allocation5 + $0x380] sm:$0xff] %v1415
    %1672 = vst [vmem:[#allocation5 + $0x388] sm:$0xff] %v1416
    %1673 = vst [vmem:[#allocation5 + $0x390] sm:$0xff] %v1417
    %1674 = vst [vmem:[#allocation5 + $0x398] sm:$0xff] %v1418
    %1675 = vst [vmem:[#allocation5 + $0x3a0] sm:$0xff] %v1419
    %1676 = vst [vmem:[#allocation5 + $0x3a8] sm:$0xff] %v1420
    %1677 = vst [vmem:[#allocation5 + $0x3b0] sm:$0xff] %v1421
    %1678 = vst [vmem:[#allocation5 + $0x3b8] sm:$0xff] %v1422
    %1679 = vst [vmem:[#allocation5 + $0x3c0] sm:$0xff] %v1423
    %1680 = vst [vmem:[#allocation5 + $0x3c8] sm:$0xff] %v1424
    %1681 = vst [vmem:[#allocation5 + $0x3d0] sm:$0xff] %v1425
    %1682 = vst [vmem:[#allocation5 + $0x3d8] sm:$0xff] %v1426
    %1683 = vst [vmem:[#allocation5 + $0x3e0] sm:$0xff] %v1427
    %1684 = vst [vmem:[#allocation5 + $0x3e8] sm:$0xff] %v1428
    %1685 = vst [vmem:[#allocation5 + $0x3f0] sm:$0xff] %v1429
    %1686 = vst [vmem:[#allocation5 + $0x3f8] sm:$0xff] %v1430
    %1687 = vst [vmem:[#allocation5 + $0x400] sm:$0xff] %v1431
    %1688 = vst [vmem:[#allocation5 + $0x408] sm:$0xff] %v1432
    %1689 = vst [vmem:[#allocation5 + $0x410] sm:$0xff] %v1433
    %1690 = vst [vmem:[#allocation5 + $0x418] sm:$0xff] %v1434
    %1691 = vst [vmem:[#allocation5 + $0x420] sm:$0xff] %v1435
    %1692 = vst [vmem:[#allocation5 + $0x428] sm:$0xff] %v1436
    %1693 = vst [vmem:[#allocation5 + $0x430] sm:$0xff] %v1437
    %1694 = vst [vmem:[#allocation5 + $0x438] sm:$0xff] %v1438
    %1695 = vst [vmem:[#allocation5 + $0x440] sm:$0xff] %v1439
    %1696 = vst [vmem:[#allocation5 + $0x448] sm:$0xff] %v1440
    %1697 = vst [vmem:[#allocation5 + $0x450] sm:$0xff] %v1441
    %1698 = vst [vmem:[#allocation5 + $0x458] sm:$0xff] %v1442
    %1699 = vst [vmem:[#allocation5 + $0x460] sm:$0xff] %v1443
    %1700 = vst [vmem:[#allocation5 + $0x468] sm:$0xff] %v1444
    %1701 = vst [vmem:[#allocation5 + $0x470] sm:$0xff] %v1445
    %1702 = vst [vmem:[#allocation5 + $0x478] sm:$0xff] %v1446
    %1703 = vst [vmem:[#allocation5 + $0x480] sm:$0xff] %v1447
    %1704 = vst [vmem:[#allocation5 + $0x488] sm:$0xff] %v1448
    %1705 = vst [vmem:[#allocation5 + $0x490] sm:$0xff] %v1449
    %1706 = vst [vmem:[#allocation5 + $0x498] sm:$0xff] %v1450
    %1707 = vst [vmem:[#allocation5 + $0x4a0] sm:$0xff] %v1451
    %1708 = vst [vmem:[#allocation5 + $0x4a8] sm:$0xff] %v1452
    %1709 = vst [vmem:[#allocation5 + $0x4b0] sm:$0xff] %v1453
    %1710 = vst [vmem:[#allocation5 + $0x4b8] sm:$0xff] %v1454
    %1711 = vst [vmem:[#allocation5 + $0x4c0] sm:$0xff] %v1455
    %1712 = vst [vmem:[#allocation5 + $0x4c8] sm:$0xff] %v1456
    %1713 = vst [vmem:[#allocation5 + $0x4d0] sm:$0xff] %v1457
    %1714 = vst [vmem:[#allocation5 + $0x4d8] sm:$0xff] %v1458
    %1715 = vst [vmem:[#allocation5 + $0x4e0] sm:$0xff] %v1459
    %1716 = vst [vmem:[#allocation5 + $0x4e8] sm:$0xff] %v1460
    %1717 = vst [vmem:[#allocation5 + $0x4f0] sm:$0xff] %v1461
    %1718 = vst [vmem:[#allocation5 + $0x4f8] sm:$0xff] %v1462
    %1719 = vst [vmem:[#allocation5 + $0x500] sm:$0xff] %v1463
    %1720 = vst [vmem:[#allocation5 + $0x508] sm:$0xff] %v1464
    %1721 = vst [vmem:[#allocation5 + $0x510] sm:$0xff] %v1465
    %1722 = vst [vmem:[#allocation5 + $0x518] sm:$0xff] %v1466
    %1723 = vst [vmem:[#allocation5 + $0x520] sm:$0xff] %v1467
    %1724 = vst [vmem:[#allocation5 + $0x528] sm:$0xff] %v1468
    %1725 = vst [vmem:[#allocation5 + $0x530] sm:$0xff] %v1469
    %1726 = vst [vmem:[#allocation5 + $0x538] sm:$0xff] %v1470
    %1727 = vst [vmem:[#allocation5 + $0x540] sm:$0xff] %v1471
    %1728 = vst [vmem:[#allocation5 + $0x548] sm:$0xff] %v1472
    %1729 = vst [vmem:[#allocation5 + $0x550] sm:$0xff] %v1473
    %1730 = vst [vmem:[#allocation5 + $0x558] sm:$0xff] %v1474
    %1731 = vst [vmem:[#allocation5 + $0x560] sm:$0xff] %v1475
    %1732 = vst [vmem:[#allocation5 + $0x568] sm:$0xff] %v1476
    %1733 = vst [vmem:[#allocation5 + $0x570] sm:$0xff] %v1477
    %1734 = vst [vmem:[#allocation5 + $0x578] sm:$0xff] %v1478
    %1735 = vst [vmem:[#allocation5 + $0x580] sm:$0xff] %v1479
    %1736 = vst [vmem:[#allocation5 + $0x588] sm:$0xff] %v1480
    %1737 = vst [vmem:[#allocation5 + $0x590] sm:$0xff] %v1481
    %1738 = vst [vmem:[#allocation5 + $0x598] sm:$0xff] %v1482
    %1739 = vst [vmem:[#allocation5 + $0x5a0] sm:$0xff] %v1483
    %1740 = vst [vmem:[#allocation5 + $0x5a8] sm:$0xff] %v1484
    %1741 = vst [vmem:[#allocation5 + $0x5b0] sm:$0xff] %v1485
    %1742 = vst [vmem:[#allocation5 + $0x5b8] sm:$0xff] %v1486
    %1743 = vst [vmem:[#allocation5 + $0x5c0] sm:$0xff] %v1487
    %1744 = vst [vmem:[#allocation5 + $0x5c8] sm:$0xff] %v1488
    %1745 = vst [vmem:[#allocation5 + $0x5d0] sm:$0xff] %v1489
    %1746 = vst [vmem:[#allocation5 + $0x5d8] sm:$0xff] %v1490
    %1747 = vst [vmem:[#allocation5 + $0x5e0] sm:$0xff] %v1491
    %1748 = vst [vmem:[#allocation5 + $0x5e8] sm:$0xff] %v1492
    %1749 = vst [vmem:[#allocation5 + $0x5f0] sm:$0xff] %v1493
    %1750 = vst [vmem:[#allocation5 + $0x5f8] sm:$0xff] %v1494
    %1751 = vst [vmem:[#allocation5 + $0x600] sm:$0xff] %v1495
    %1752 = vst [vmem:[#allocation5 + $0x608] sm:$0xff] %v1496
    %1753 = vst [vmem:[#allocation5 + $0x610] sm:$0xff] %v1497
    %1754 = vst [vmem:[#allocation5 + $0x618] sm:$0xff] %v1498
    %1755 = vst [vmem:[#allocation5 + $0x620] sm:$0xff] %v1499
    %1756 = vst [vmem:[#allocation5 + $0x628] sm:$0xff] %v1500
    %1757 = vst [vmem:[#allocation5 + $0x630] sm:$0xff] %v1501
    %1758 = vst [vmem:[#allocation5 + $0x638] sm:$0xff] %v1502
    %1759 = vst [vmem:[#allocation5 + $0x640] sm:$0xff] %v1503
    %1760 = vst [vmem:[#allocation5 + $0x648] sm:$0xff] %v1504
    %1761 = vst [vmem:[#allocation5 + $0x650] sm:$0xff] %v1505
    %1762 = vst [vmem:[#allocation5 + $0x658] sm:$0xff] %v1506
    %1763 = vst [vmem:[#allocation5 + $0x660] sm:$0xff] %v1507
    %1764 = vst [vmem:[#allocation5 + $0x668] sm:$0xff] %v1508
    %1765 = vst [vmem:[#allocation5 + $0x670] sm:$0xff] %v1509
    %1766 = vst [vmem:[#allocation5 + $0x678] sm:$0xff] %v1510
    %1767 = vst [vmem:[#allocation5 + $0x680] sm:$0xff] %v1511
    %1768 = vst [vmem:[#allocation5 + $0x688] sm:$0xff] %v1512
    %1769 = vst [vmem:[#allocation5 + $0x690] sm:$0xff] %v1513
    %1770 = vst [vmem:[#allocation5 + $0x698] sm:$0xff] %v1514
    %1771 = vst [vmem:[#allocation5 + $0x6a0] sm:$0xff] %v1515
    %1772 = vst [vmem:[#allocation5 + $0x6a8] sm:$0xff] %v1516
    %1773 = vst [vmem:[#allocation5 + $0x6b0] sm:$0xff] %v1517
    %1774 = vst [vmem:[#allocation5 + $0x6b8] sm:$0xff] %v1518
    %1775 = vst [vmem:[#allocation5 + $0x6c0] sm:$0xff] %v1519
    %1776 = vst [vmem:[#allocation5 + $0x6c8] sm:$0xff] %v1520
    %1777 = vst [vmem:[#allocation5 + $0x6d0] sm:$0xff] %v1521
    %1778 = vst [vmem:[#allocation5 + $0x6d8] sm:$0xff] %v1522
    %1779 = vst [vmem:[#allocation5 + $0x6e0] sm:$0xff] %v1523
    %1780 = vst [vmem:[#allocation5 + $0x6e8] sm:$0xff] %v1524
    %1781 = vst [vmem:[#allocation5 + $0x6f0] sm:$0xff] %v1525
    %1782 = vst [vmem:[#allocation5 + $0x6f8] sm:$0xff] %v1526
    %1783 = vst [vmem:[#allocation5 + $0x700] sm:$0xff] %v1527
    %1784 = vst [vmem:[#allocation5 + $0x708] sm:$0xff] %v1528
    %1785 = vst [vmem:[#allocation5 + $0x710] sm:$0xff] %v1529
    %1786 = vst [vmem:[#allocation5 + $0x718] sm:$0xff] %v1530
    %1787 = vst [vmem:[#allocation5 + $0x720] sm:$0xff] %v1531
    %1788 = vst [vmem:[#allocation5 + $0x728] sm:$0xff] %v1532
    %1789 = vst [vmem:[#allocation5 + $0x730] sm:$0xff] %v1533
    %1790 = vst [vmem:[#allocation5 + $0x738] sm:$0xff] %v1534
    %1791 = vst [vmem:[#allocation5 + $0x740] sm:$0xff] %v1535
    %1792 = vst [vmem:[#allocation5 + $0x748] sm:$0xff] %v1536
    %1793 = vst [vmem:[#allocation5 + $0x750] sm:$0xff] %v1537
    %1794 = vst [vmem:[#allocation5 + $0x758] sm:$0xff] %v1538
    %1795 = vst [vmem:[#allocation5 + $0x760] sm:$0xff] %v1539
    %1796 = vst [vmem:[#allocation5 + $0x768] sm:$0xff] %v1540
    %1797 = vst [vmem:[#allocation5 + $0x770] sm:$0xff] %v1541
    %1798 = vst [vmem:[#allocation5 + $0x778] sm:$0xff] %v1542
    %1799 = vst [vmem:[#allocation5 + $0x780] sm:$0xff] %v1543
    %1800 = vst [vmem:[#allocation5 + $0x788] sm:$0xff] %v1544
    %1801 = vst [vmem:[#allocation5 + $0x790] sm:$0xff] %v1545
    %1802 = vst [vmem:[#allocation5 + $0x798] sm:$0xff] %v1546
    %1803 = vst [vmem:[#allocation5 + $0x7a0] sm:$0xff] %v1547
    %1804 = vst [vmem:[#allocation5 + $0x7a8] sm:$0xff] %v1548
    %1805 = vst [vmem:[#allocation5 + $0x7b0] sm:$0xff] %v1549
    %1806 = vst [vmem:[#allocation5 + $0x7b8] sm:$0xff] %v1550
    %1807 = vst [vmem:[#allocation5 + $0x7c0] sm:$0xff] %v1551
    %1808 = vst [vmem:[#allocation5 + $0x7c8] sm:$0xff] %v1552
    %1809 = vst [vmem:[#allocation5 + $0x7d0] sm:$0xff] %v1553
    %1810 = vst [vmem:[#allocation5 + $0x7d8] sm:$0xff] %v1554
    %1811 = vst [vmem:[#allocation5 + $0x7e0] sm:$0xff] %v1555
    %1812 = vst [vmem:[#allocation5 + $0x7e8] sm:$0xff] %v1556
    %1813 = vst [vmem:[#allocation5 + $0x7f0] sm:$0xff] %v1557
    %1814 = vst [vmem:[#allocation5 + $0x7f8] sm:$0xff] %v1558
    // Predicated region
    $region10: #{tpu_custom_call.1} parent=1 // pred_check
      _
    $region11: #{tpu_custom_call.1} parent=1 // pred_check_branch
      %1816 = sbr.rel (0) target = $region13
    $region12: #{tpu_custom_call.1} parent=1 // pred_region
      %s1818 = ssub.s32 32768, 32768
      %1819 = vsyncadd [#allocation4], %s1818
      %s1820 = sshll.u32 [#allocation5], 4
      %s1821 = int_to_ptr.vmem [resolvable:$true] %s1820
      %1826 = dma.vmem_to_hbm [thread:$0]  %s1821, 32768, %s1, [#allocation4], 128, 128, 8
    $region13: #{tpu_custom_call.1} parent=1 // pred_fallthru
      _
    // Predicated region
    $region14: #{tpu_custom_call.1} parent=1 // pred_check
      _
    $region15: #{tpu_custom_call.1} parent=1 // pred_check_branch
      %1828 = sbr.rel (0) target = $region17
    $region16: #{tpu_custom_call.1} parent=1 // pred_region
      %1829 = dma.done [#allocation4], 32768
    $region17: #{tpu_custom_call.1} parent=1 // pred_fallthru
      _
    %1830 = vsyncpa [#allocation3], 1
    %1831 = vsyncpa [#allocation4], 1

</llo_original>
